<compile_context>
chip_gen: v6e
topology: v6e:2x2x1
jax: 0.10.0
libtpu: 0.0.40
codegen_flags: <defaults>
</compile_context>

<pallas_src>
import functools

import jax
import jax.numpy as jnp
from jax.experimental import pallas as pl
from jax.experimental.pallas import tpu as pltpu


def _spatial_attention_kernel(x_ref, w_ref, o_ref, pad_ref, sh_ref, *, ksize, pad):
    # x_ref  : (Bt, C, H, W)        VMEM  -- Bt batch elements
    # w_ref  : (k*k,)               SMEM  -- conv weight (row-major), scalar reads
    # o_ref  : (Bt, H, W)           VMEM  -- singleton channel dim squeezed out
    # pad_ref: (Bt, H+2p, W+2p)     VMEM  -- zero-padded channel-max plane
    # sh_ref : (k, Bt, H+2p, W)     VMEM  -- k column-shifted copies of pad_ref
    Bt, C, H, W = x_ref.shape
    Hp = H + 2 * pad
    Wp = W + 2 * pad

    # ---- channel max (elementwise max across the C planes; VPU) -----------
    m = jnp.max(x_ref[...], axis=1).astype(jnp.float32)          # (Bt, H, W)

    # ---- zero-padded plane: zero only the halo strips, then the interior ---
    zrow = jnp.zeros((Bt, pad, Wp), jnp.float32)
    zcol = jnp.zeros((Bt, Hp, pad), jnp.float32)
    pad_ref[:, 0:pad, :] = zrow                 # top halo rows
    pad_ref[:, pad + H:Hp, :] = zrow            # bottom halo rows
    pad_ref[:, :, 0:pad] = zcol                 # left halo cols
    pad_ref[:, :, pad + W:Wp] = zcol            # right halo cols
    pad_ref[:, pad:pad + H, pad:pad + W] = m    # interior

    # ---- hoisted column (lane) shifts: k shifted planes built once --------
    # sh_ref[dj][b, r, j] == pad_ref[b, r, j + dj]  (zero row halo included),
    # so the tap loop below only needs row(sublane)-offset loads.
    for dj in range(ksize):
        sh_ref[dj] = pad_ref[:, :, dj:dj + W]

    # ---- k*k-tap conv: 4 independent partial accumulators ------------------
    accs = [jnp.zeros((Bt, H, W), jnp.float32) for _ in range(4)]
    t = 0
    for dj in range(ksize):
        for di in range(ksize):
            tap = sh_ref[dj, :, di:di + H, :]          # sublane-offset load
            accs[t % 4] = accs[t % 4] + w_ref[di * ksize + dj] * tap
            t += 1
    acc = (accs[0] + accs[1]) + (accs[2] + accs[3])

    o_ref[...] = jax.nn.sigmoid(acc).astype(o_ref.dtype)


def _pick_batch_tile(N, C, H, W, itemsize):
    """Pick a batch tile Bt (divisor of N, <= 8) such that
       * the x block stays <= 4 MiB in VMEM (double-buffered by the pipeline),
       * the 4 partial conv accumulators fit comfortably in vregs,
       * and, when N >= 2, the grid has at least 2 steps so the auto-pipeline
         can overlap DMA with compute and v7x can split the 'parallel' axis
         across its two TensorCores."""
    vregs_per_elem = -(-H // 8) * -(-W // 128)          # (8,128) vreg tiles

    def ok(cand):
        if cand * C * H * W * itemsize > (4 << 20):
            return False
        if 4 * cand * vregs_per_elem > 32:              # 4 partial accumulators
            return False
        return True

    divisors = [d for d in range(1, min(N, 8) + 1) if N % d == 0 and ok(d)]
    if not divisors:
        return 1
    multi_step = [d for d in divisors if N // d >= 2]
    return max(multi_step) if multi_step else max(divisors)


def spatial_attention(x, weight, kernel_size=7):
    """x: (N, C, H, W); weight: (1, 1, k, k). Returns sigmoid(conv(max_c x))."""
    assert kernel_size in (3, 7), "kernel size must be 3 or 7"
    pad = 3 if kernel_size == 7 else 1
    N, C, H, W = x.shape
    # Flattened row-major: w_flat[di*k + dj] == weight[0, 0, di, dj].
    w_flat = weight.reshape(kernel_size * kernel_size).astype(jnp.float32)

    bt = _pick_batch_tile(N, C, H, W, jnp.dtype(x.dtype).itemsize)

    kernel = functools.partial(_spatial_attention_kernel, ksize=kernel_size, pad=pad)

    return pl.pallas_call(
        kernel,
        out_shape=jax.ShapeDtypeStruct((N, 1, H, W), x.dtype),
        grid=(N // bt,),
        in_specs=[
            pl.BlockSpec((bt, C, H, W), lambda n: (n, 0, 0, 0)),
            pl.BlockSpec(memory_space=pltpu.MemorySpace.SMEM),
        ],
        # Singleton channel dim squeezed out of the kernel ref (block dim None).
        out_specs=pl.BlockSpec((bt, None, H, W), lambda n: (n, 0, 0, 0)),
        scratch_shapes=[
            pltpu.VMEM((bt, H + 2 * pad, W + 2 * pad), jnp.float32),
            pltpu.VMEM((kernel_size, bt, H + 2 * pad, W), jnp.float32),
        ],
        compiler_params=pltpu.CompilerParams(
            # Batch tiles are independent -> shard across v7x's 2 TensorCores.
            dimension_semantics=("parallel",),
            # Raise v5e's 16 MiB default scoped-VMEM limit; safe on all gens.
            vmem_limit_bytes=32 * 1024 * 1024,
        ),
    )(x, w_flat)


def _reference(x, weight, kernel_size=7):
    """Pure-JAX reference matching the PyTorch forward."""
    pad = 3 if kernel_size == 7 else 1
    m = jnp.max(x, axis=1, keepdims=True)
    y = jax.lax.conv_general_dilated(
        m, weight,
        window_strides=(1, 1),
        padding=[(pad, pad), (pad, pad)],
        dimension_numbers=("NCHW", "OIHW", "NCHW"),
    )
    return jax.nn.sigmoid(y)


if __name__ == "__main__":
    key = jax.random.PRNGKey(0)
    kx, kw = jax.random.split(key)

    N, C, H, W = 2, 4, 16, 16
    ksize = 7

    x = jax.random.normal(kx, (N, C, H, W), dtype=jnp.float32)

    # Deterministic Conv2d-style init: U(-1/sqrt(fan_in), 1/sqrt(fan_in)),
    # fan_in = in_channels * k * k = 49.
    fan_in = 1 * ksize * ksize
    bound = 1.0 / (fan_in ** 0.5)
    weight = jax.random.uniform(kw, (1, 1, ksize, ksize), jnp.float32, -bound, bound)

    out = spatial_attention(x, weight, kernel_size=ksize)
    out = jax.block_until_ready(out)

    ref = _reference(x, weight, kernel_size=ksize)
    assert out.shape == (N, 1, H, W), out.shape
    err = float(jnp.max(jnp.abs(out - ref)))
    assert err < 1e-5, err

    print("KERNEL_OK")
</pallas_src>

<mosaic_0001>
module attributes {stable_mosaic.version = 11 : i64} {
  func.func @_spatial_attention_kernel(%arg0: i32, %arg1: memref<1x4x16x16xf32, #tpu.memory_space<vmem>>, %arg2: memref<49xf32, #tpu.memory_space<smem>>, %arg3: memref<1x1x16x16xf32, #tpu.memory_space<vmem>>, %arg4: memref<1x22x22xf32, #tpu.memory_space<vmem>>, %arg5: memref<7x1x22x16xf32, #tpu.memory_space<vmem>>) attributes {dimension_semantics = [#tpu.dimension_semantics<parallel>], iteration_bounds = array<i64: 2>, scalar_prefetch = 0 : i64, scratch_operands = 2 : i64, tpu.core_type = #tpu.core_type<tc>, window_params = [{transform_indices = @transform_0, window_bounds = array<i64: 1, 4, 16, 16>}, {transform_indices = @transform_1, window_bounds = array<i64: 49>}, {transform_indices = @transform_2, window_bounds = array<i64: 1, 1, 16, 16>}]} {
    %c0 = arith.constant 0 : index
    %c0_0 = arith.constant 0 : index
    %c0_1 = arith.constant 0 : index
    %c0_2 = arith.constant 0 : index
    %0 = vector.load %arg1[%c0, %c0_0, %c0_1, %c0_2] : memref<1x4x16x16xf32, #tpu.memory_space<vmem>>, vector<1x4x16x16xf32>
    %cst = arith.constant dense<0xFF800000> : vector<1x16x16xf32>
    %1 = vector.multi_reduction <maximumf>, %0, %cst [1] : vector<1x4x16x16xf32> to vector<1x16x16xf32>
    %cst_3 = arith.constant 0.000000e+00 : f32
    %2 = vector.broadcast %cst_3 : f32 to vector<1x3x22xf32>
    %cst_4 = arith.constant 0.000000e+00 : f32
    %3 = vector.broadcast %cst_4 : f32 to vector<1x22x3xf32>
    %c0_5 = arith.constant 0 : index
    %c0_6 = arith.constant 0 : index
    %c0_7 = arith.constant 0 : index
    %4 = vector.load %arg4[%c0_5, %c0_6, %c0_7] : memref<1x22x22xf32, #tpu.memory_space<vmem>>, vector<1x3x22xf32>
    tpu.vector_store %arg4[%c0_5, %c0_6, %c0_7], %2 {strides = array<i32>} : memref<1x22x22xf32, #tpu.memory_space<vmem>>, vector<1x3x22xf32>,
    %c0_8 = arith.constant 0 : index
    %c19 = arith.constant 19 : index
    %c0_9 = arith.constant 0 : index
    %5 = vector.load %arg4[%c0_8, %c19, %c0_9] : memref<1x22x22xf32, #tpu.memory_space<vmem>>, vector<1x3x22xf32>
    tpu.vector_store %arg4[%c0_8, %c19, %c0_9], %2 {strides = array<i32>} : memref<1x22x22xf32, #tpu.memory_space<vmem>>, vector<1x3x22xf32>,
    %c0_10 = arith.constant 0 : index
    %c0_11 = arith.constant 0 : index
    %c0_12 = arith.constant 0 : index
    %6 = vector.load %arg4[%c0_10, %c0_11, %c0_12] : memref<1x22x22xf32, #tpu.memory_space<vmem>>, vector<1x22x3xf32>
    tpu.vector_store %arg4[%c0_10, %c0_11, %c0_12], %3 {strides = array<i32>} : memref<1x22x22xf32, #tpu.memory_space<vmem>>, vector<1x22x3xf32>,
    %c0_13 = arith.constant 0 : index
    %c0_14 = arith.constant 0 : index
    %c19_15 = arith.constant 19 : index
    %7 = vector.load %arg4[%c0_13, %c0_14, %c19_15] : memref<1x22x22xf32, #tpu.memory_space<vmem>>, vector<1x22x3xf32>
    tpu.vector_store %arg4[%c0_13, %c0_14, %c19_15], %3 {strides = array<i32>} : memref<1x22x22xf32, #tpu.memory_space<vmem>>, vector<1x22x3xf32>,
    %c0_16 = arith.constant 0 : index
    %c3 = arith.constant 3 : index
    %c3_17 = arith.constant 3 : index
    %8 = vector.load %arg4[%c0_16, %c3, %c3_17] : memref<1x22x22xf32, #tpu.memory_space<vmem>>, vector<1x16x16xf32>
    tpu.vector_store %arg4[%c0_16, %c3, %c3_17], %1 {strides = array<i32>} : memref<1x22x22xf32, #tpu.memory_space<vmem>>, vector<1x16x16xf32>,
    %c0_18 = arith.constant 0 : index
    %c0_19 = arith.constant 0 : index
    %c0_20 = arith.constant 0 : index
    %9 = vector.load %arg4[%c0_18, %c0_19, %c0_20] : memref<1x22x22xf32, #tpu.memory_space<vmem>>, vector<1x22x16xf32>
    %c0_21 = arith.constant 0 : index
    %c0_22 = arith.constant 0 : index
    %c0_23 = arith.constant 0 : index
    %c0_24 = arith.constant 0 : index
    %10 = vector.load %arg5[%c0_21, %c0_22, %c0_23, %c0_24] : memref<7x1x22x16xf32, #tpu.memory_space<vmem>>, vector<1x1x22x16xf32>
    %11 = vector.shape_cast %10 : vector<1x1x22x16xf32> to vector<1x22x16xf32>
    %12 = vector.shape_cast %9 : vector<1x22x16xf32> to vector<1x1x22x16xf32>
    tpu.vector_store %arg5[%c0_21, %c0_22, %c0_23, %c0_24], %12 {strides = array<i32>} : memref<7x1x22x16xf32, #tpu.memory_space<vmem>>, vector<1x1x22x16xf32>,
    %c0_25 = arith.constant 0 : index
    %c0_26 = arith.constant 0 : index
    %c1 = arith.constant 1 : index
    %13 = vector.load %arg4[%c0_25, %c0_26, %c1] : memref<1x22x22xf32, #tpu.memory_space<vmem>>, vector<1x22x16xf32>
    %c1_27 = arith.constant 1 : index
    %c0_28 = arith.constant 0 : index
    %c0_29 = arith.constant 0 : index
    %c0_30 = arith.constant 0 : index
    %14 = vector.load %arg5[%c1_27, %c0_28, %c0_29, %c0_30] : memref<7x1x22x16xf32, #tpu.memory_space<vmem>>, vector<1x1x22x16xf32>
    %15 = vector.shape_cast %14 : vector<1x1x22x16xf32> to vector<1x22x16xf32>
    %16 = vector.shape_cast %13 : vector<1x22x16xf32> to vector<1x1x22x16xf32>
    tpu.vector_store %arg5[%c1_27, %c0_28, %c0_29, %c0_30], %16 {strides = array<i32>} : memref<7x1x22x16xf32, #tpu.memory_space<vmem>>, vector<1x1x22x16xf32>,
    %c0_31 = arith.constant 0 : index
    %c0_32 = arith.constant 0 : index
    %c2 = arith.constant 2 : index
    %17 = vector.load %arg4[%c0_31, %c0_32, %c2] : memref<1x22x22xf32, #tpu.memory_space<vmem>>, vector<1x22x16xf32>
    %c2_33 = arith.constant 2 : index
    %c0_34 = arith.constant 0 : index
    %c0_35 = arith.constant 0 : index
    %c0_36 = arith.constant 0 : index
    %18 = vector.load %arg5[%c2_33, %c0_34, %c0_35, %c0_36] : memref<7x1x22x16xf32, #tpu.memory_space<vmem>>, vector<1x1x22x16xf32>
    %19 = vector.shape_cast %18 : vector<1x1x22x16xf32> to vector<1x22x16xf32>
    %20 = vector.shape_cast %17 : vector<1x22x16xf32> to vector<1x1x22x16xf32>
    tpu.vector_store %arg5[%c2_33, %c0_34, %c0_35, %c0_36], %20 {strides = array<i32>} : memref<7x1x22x16xf32, #tpu.memory_space<vmem>>, vector<1x1x22x16xf32>,
    %c0_37 = arith.constant 0 : index
    %c0_38 = arith.constant 0 : index
    %c3_39 = arith.constant 3 : index
    %21 = vector.load %arg4[%c0_37, %c0_38, %c3_39] : memref<1x22x22xf32, #tpu.memory_space<vmem>>, vector<1x22x16xf32>
    %c3_40 = arith.constant 3 : index
    %c0_41 = arith.constant 0 : index
    %c0_42 = arith.constant 0 : index
    %c0_43 = arith.constant 0 : index
    %22 = vector.load %arg5[%c3_40, %c0_41, %c0_42, %c0_43] : memref<7x1x22x16xf32, #tpu.memory_space<vmem>>, vector<1x1x22x16xf32>
    %23 = vector.shape_cast %22 : vector<1x1x22x16xf32> to vector<1x22x16xf32>
    %24 = vector.shape_cast %21 : vector<1x22x16xf32> to vector<1x1x22x16xf32>
    tpu.vector_store %arg5[%c3_40, %c0_41, %c0_42, %c0_43], %24 {strides = array<i32>} : memref<7x1x22x16xf32, #tpu.memory_space<vmem>>, vector<1x1x22x16xf32>,
    %c0_44 = arith.constant 0 : index
    %c0_45 = arith.constant 0 : index
    %c4 = arith.constant 4 : index
    %25 = vector.load %arg4[%c0_44, %c0_45, %c4] : memref<1x22x22xf32, #tpu.memory_space<vmem>>, vector<1x22x16xf32>
    %c4_46 = arith.constant 4 : index
    %c0_47 = arith.constant 0 : index
    %c0_48 = arith.constant 0 : index
    %c0_49 = arith.constant 0 : index
    %26 = vector.load %arg5[%c4_46, %c0_47, %c0_48, %c0_49] : memref<7x1x22x16xf32, #tpu.memory_space<vmem>>, vector<1x1x22x16xf32>
    %27 = vector.shape_cast %26 : vector<1x1x22x16xf32> to vector<1x22x16xf32>
    %28 = vector.shape_cast %25 : vector<1x22x16xf32> to vector<1x1x22x16xf32>
    tpu.vector_store %arg5[%c4_46, %c0_47, %c0_48, %c0_49], %28 {strides = array<i32>} : memref<7x1x22x16xf32, #tpu.memory_space<vmem>>, vector<1x1x22x16xf32>,
    %c0_50 = arith.constant 0 : index
    %c0_51 = arith.constant 0 : index
    %c5 = arith.constant 5 : index
    %29 = vector.load %arg4[%c0_50, %c0_51, %c5] : memref<1x22x22xf32, #tpu.memory_space<vmem>>, vector<1x22x16xf32>
    %c5_52 = arith.constant 5 : index
    %c0_53 = arith.constant 0 : index
    %c0_54 = arith.constant 0 : index
    %c0_55 = arith.constant 0 : index
    %30 = vector.load %arg5[%c5_52, %c0_53, %c0_54, %c0_55] : memref<7x1x22x16xf32, #tpu.memory_space<vmem>>, vector<1x1x22x16xf32>
    %31 = vector.shape_cast %30 : vector<1x1x22x16xf32> to vector<1x22x16xf32>
    %32 = vector.shape_cast %29 : vector<1x22x16xf32> to vector<1x1x22x16xf32>
    tpu.vector_store %arg5[%c5_52, %c0_53, %c0_54, %c0_55], %32 {strides = array<i32>} : memref<7x1x22x16xf32, #tpu.memory_space<vmem>>, vector<1x1x22x16xf32>,
    %c0_56 = arith.constant 0 : index
    %c0_57 = arith.constant 0 : index
    %c6 = arith.constant 6 : index
    %33 = vector.load %arg4[%c0_56, %c0_57, %c6] : memref<1x22x22xf32, #tpu.memory_space<vmem>>, vector<1x22x16xf32>
    %c6_58 = arith.constant 6 : index
    %c0_59 = arith.constant 0 : index
    %c0_60 = arith.constant 0 : index
    %c0_61 = arith.constant 0 : index
    %34 = vector.load %arg5[%c6_58, %c0_59, %c0_60, %c0_61] : memref<7x1x22x16xf32, #tpu.memory_space<vmem>>, vector<1x1x22x16xf32>
    %35 = vector.shape_cast %34 : vector<1x1x22x16xf32> to vector<1x22x16xf32>
    %36 = vector.shape_cast %33 : vector<1x22x16xf32> to vector<1x1x22x16xf32>
    tpu.vector_store %arg5[%c6_58, %c0_59, %c0_60, %c0_61], %36 {strides = array<i32>} : memref<7x1x22x16xf32, #tpu.memory_space<vmem>>, vector<1x1x22x16xf32>,
    %cst_62 = arith.constant 0.000000e+00 : f32
    %37 = vector.broadcast %cst_62 : f32 to vector<1x16x16xf32>
    %cst_63 = arith.constant 0.000000e+00 : f32
    %38 = vector.broadcast %cst_63 : f32 to vector<1x16x16xf32>
    %cst_64 = arith.constant 0.000000e+00 : f32
    %39 = vector.broadcast %cst_64 : f32 to vector<1x16x16xf32>
    %cst_65 = arith.constant 0.000000e+00 : f32
    %40 = vector.broadcast %cst_65 : f32 to vector<1x16x16xf32>
    %c0_66 = arith.constant 0 : index
    %c0_67 = arith.constant 0 : index
    %c0_68 = arith.constant 0 : index
    %c0_69 = arith.constant 0 : index
    %41 = vector.load %arg5[%c0_66, %c0_67, %c0_68, %c0_69] : memref<7x1x22x16xf32, #tpu.memory_space<vmem>>, vector<1x1x16x16xf32>
    %42 = vector.shape_cast %41 : vector<1x1x16x16xf32> to vector<1x16x16xf32>
    %c0_70 = arith.constant 0 : index
    %43 = memref.load %arg2[%c0_70] : memref<49xf32, #tpu.memory_space<smem>>
    %44 = vector.broadcast %43 : f32 to vector<1x16x16xf32>
    %45 = arith.mulf %44, %42 : vector<1x16x16xf32>
    %46 = arith.addf %37, %45 : vector<1x16x16xf32>
    %c0_71 = arith.constant 0 : index
    %c0_72 = arith.constant 0 : index
    %c1_73 = arith.constant 1 : index
    %c0_74 = arith.constant 0 : index
    %47 = vector.load %arg5[%c0_71, %c0_72, %c1_73, %c0_74] : memref<7x1x22x16xf32, #tpu.memory_space<vmem>>, vector<1x1x16x16xf32>
    %48 = vector.shape_cast %47 : vector<1x1x16x16xf32> to vector<1x16x16xf32>
    %c7 = arith.constant 7 : index
    %49 = memref.load %arg2[%c7] : memref<49xf32, #tpu.memory_space<smem>>
    %50 = vector.broadcast %49 : f32 to vector<1x16x16xf32>
    %51 = arith.mulf %50, %48 : vector<1x16x16xf32>
    %52 = arith.addf %38, %51 : vector<1x16x16xf32>
    %c0_75 = arith.constant 0 : index
    %c0_76 = arith.constant 0 : index
    %c2_77 = arith.constant 2 : index
    %c0_78 = arith.constant 0 : index
    %53 = vector.load %arg5[%c0_75, %c0_76, %c2_77, %c0_78] : memref<7x1x22x16xf32, #tpu.memory_space<vmem>>, vector<1x1x16x16xf32>
    %54 = vector.shape_cast %53 : vector<1x1x16x16xf32> to vector<1x16x16xf32>
    %c14 = arith.constant 14 : index
    %55 = memref.load %arg2[%c14] : memref<49xf32, #tpu.memory_space<smem>>
    %56 = vector.broadcast %55 : f32 to vector<1x16x16xf32>
    %57 = arith.mulf %56, %54 : vector<1x16x16xf32>
    %58 = arith.addf %39, %57 : vector<1x16x16xf32>
    %c0_79 = arith.constant 0 : index
    %c0_80 = arith.constant 0 : index
    %c3_81 = arith.constant 3 : index
    %c0_82 = arith.constant 0 : index
    %59 = vector.load %arg5[%c0_79, %c0_80, %c3_81, %c0_82] : memref<7x1x22x16xf32, #tpu.memory_space<vmem>>, vector<1x1x16x16xf32>
    %60 = vector.shape_cast %59 : vector<1x1x16x16xf32> to vector<1x16x16xf32>
    %c21 = arith.constant 21 : index
    %61 = memref.load %arg2[%c21] : memref<49xf32, #tpu.memory_space<smem>>
    %62 = vector.broadcast %61 : f32 to vector<1x16x16xf32>
    %63 = arith.mulf %62, %60 : vector<1x16x16xf32>
    %64 = arith.addf %40, %63 : vector<1x16x16xf32>
    %c0_83 = arith.constant 0 : index
    %c0_84 = arith.constant 0 : index
    %c4_85 = arith.constant 4 : index
    %c0_86 = arith.constant 0 : index
    %65 = vector.load %arg5[%c0_83, %c0_84, %c4_85, %c0_86] : memref<7x1x22x16xf32, #tpu.memory_space<vmem>>, vector<1x1x16x16xf32>
    %66 = vector.shape_cast %65 : vector<1x1x16x16xf32> to vector<1x16x16xf32>
    %c28 = arith.constant 28 : index
    %67 = memref.load %arg2[%c28] : memref<49xf32, #tpu.memory_space<smem>>
    %68 = vector.broadcast %67 : f32 to vector<1x16x16xf32>
    %69 = arith.mulf %68, %66 : vector<1x16x16xf32>
    %70 = arith.addf %46, %69 : vector<1x16x16xf32>
    %c0_87 = arith.constant 0 : index
    %c0_88 = arith.constant 0 : index
    %c5_89 = arith.constant 5 : index
    %c0_90 = arith.constant 0 : index
    %71 = vector.load %arg5[%c0_87, %c0_88, %c5_89, %c0_90] : memref<7x1x22x16xf32, #tpu.memory_space<vmem>>, vector<1x1x16x16xf32>
    %72 = vector.shape_cast %71 : vector<1x1x16x16xf32> to vector<1x16x16xf32>
    %c35 = arith.constant 35 : index
    %73 = memref.load %arg2[%c35] : memref<49xf32, #tpu.memory_space<smem>>
    %74 = vector.broadcast %73 : f32 to vector<1x16x16xf32>
    %75 = arith.mulf %74, %72 : vector<1x16x16xf32>
    %76 = arith.addf %52, %75 : vector<1x16x16xf32>
    %c0_91 = arith.constant 0 : index
    %c0_92 = arith.constant 0 : index
    %c6_93 = arith.constant 6 : index
    %c0_94 = arith.constant 0 : index
    %77 = vector.load %arg5[%c0_91, %c0_92, %c6_93, %c0_94] : memref<7x1x22x16xf32, #tpu.memory_space<vmem>>, vector<1x1x16x16xf32>
    %78 = vector.shape_cast %77 : vector<1x1x16x16xf32> to vector<1x16x16xf32>
    %c42 = arith.constant 42 : index
    %79 = memref.load %arg2[%c42] : memref<49xf32, #tpu.memory_space<smem>>
    %80 = vector.broadcast %79 : f32 to vector<1x16x16xf32>
    %81 = arith.mulf %80, %78 : vector<1x16x16xf32>
    %82 = arith.addf %58, %81 : vector<1x16x16xf32>
    %c1_95 = arith.constant 1 : index
    %c0_96 = arith.constant 0 : index
    %c0_97 = arith.constant 0 : index
    %c0_98 = arith.constant 0 : index
    %83 = vector.load %arg5[%c1_95, %c0_96, %c0_97, %c0_98] : memref<7x1x22x16xf32, #tpu.memory_space<vmem>>, vector<1x1x16x16xf32>
    %84 = vector.shape_cast %83 : vector<1x1x16x16xf32> to vector<1x16x16xf32>
    %c1_99 = arith.constant 1 : index
    %85 = memref.load %arg2[%c1_99] : memref<49xf32, #tpu.memory_space<smem>>
    %86 = vector.broadcast %85 : f32 to vector<1x16x16xf32>
    %87 = arith.mulf %86, %84 : vector<1x16x16xf32>
    %88 = arith.addf %64, %87 : vector<1x16x16xf32>
    %c1_100 = arith.constant 1 : index
    %c0_101 = arith.constant 0 : index
    %c1_102 = arith.constant 1 : index
    %c0_103 = arith.constant 0 : index
    %89 = vector.load %arg5[%c1_100, %c0_101, %c1_102, %c0_103] : memref<7x1x22x16xf32, #tpu.memory_space<vmem>>, vector<1x1x16x16xf32>
    %90 = vector.shape_cast %89 : vector<1x1x16x16xf32> to vector<1x16x16xf32>
    %c8 = arith.constant 8 : index
    %91 = memref.load %arg2[%c8] : memref<49xf32, #tpu.memory_space<smem>>
    %92 = vector.broadcast %91 : f32 to vector<1x16x16xf32>
    %93 = arith.mulf %92, %90 : vector<1x16x16xf32>
    %94 = arith.addf %70, %93 : vector<1x16x16xf32>
    %c1_104 = arith.constant 1 : index
    %c0_105 = arith.constant 0 : index
    %c2_106 = arith.constant 2 : index
    %c0_107 = arith.constant 0 : index
    %95 = vector.load %arg5[%c1_104, %c0_105, %c2_106, %c0_107] : memref<7x1x22x16xf32, #tpu.memory_space<vmem>>, vector<1x1x16x16xf32>
    %96 = vector.shape_cast %95 : vector<1x1x16x16xf32> to vector<1x16x16xf32>
    %c15 = arith.constant 15 : index
    %97 = memref.load %arg2[%c15] : memref<49xf32, #tpu.memory_space<smem>>
    %98 = vector.broadcast %97 : f32 to vector<1x16x16xf32>
    %99 = arith.mulf %98, %96 : vector<1x16x16xf32>
    %100 = arith.addf %76, %99 : vector<1x16x16xf32>
    %c1_108 = arith.constant 1 : index
    %c0_109 = arith.constant 0 : index
    %c3_110 = arith.constant 3 : index
    %c0_111 = arith.constant 0 : index
    %101 = vector.load %arg5[%c1_108, %c0_109, %c3_110, %c0_111] : memref<7x1x22x16xf32, #tpu.memory_space<vmem>>, vector<1x1x16x16xf32>
    %102 = vector.shape_cast %101 : vector<1x1x16x16xf32> to vector<1x16x16xf32>
    %c22 = arith.constant 22 : index
    %103 = memref.load %arg2[%c22] : memref<49xf32, #tpu.memory_space<smem>>
    %104 = vector.broadcast %103 : f32 to vector<1x16x16xf32>
    %105 = arith.mulf %104, %102 : vector<1x16x16xf32>
    %106 = arith.addf %82, %105 : vector<1x16x16xf32>
    %c1_112 = arith.constant 1 : index
    %c0_113 = arith.constant 0 : index
    %c4_114 = arith.constant 4 : index
    %c0_115 = arith.constant 0 : index
    %107 = vector.load %arg5[%c1_112, %c0_113, %c4_114, %c0_115] : memref<7x1x22x16xf32, #tpu.memory_space<vmem>>, vector<1x1x16x16xf32>
    %108 = vector.shape_cast %107 : vector<1x1x16x16xf32> to vector<1x16x16xf32>
    %c29 = arith.constant 29 : index
    %109 = memref.load %arg2[%c29] : memref<49xf32, #tpu.memory_space<smem>>
    %110 = vector.broadcast %109 : f32 to vector<1x16x16xf32>
    %111 = arith.mulf %110, %108 : vector<1x16x16xf32>
    %112 = arith.addf %88, %111 : vector<1x16x16xf32>
    %c1_116 = arith.constant 1 : index
    %c0_117 = arith.constant 0 : index
    %c5_118 = arith.constant 5 : index
    %c0_119 = arith.constant 0 : index
    %113 = vector.load %arg5[%c1_116, %c0_117, %c5_118, %c0_119] : memref<7x1x22x16xf32, #tpu.memory_space<vmem>>, vector<1x1x16x16xf32>
    %114 = vector.shape_cast %113 : vector<1x1x16x16xf32> to vector<1x16x16xf32>
    %c36 = arith.constant 36 : index
    %115 = memref.load %arg2[%c36] : memref<49xf32, #tpu.memory_space<smem>>
    %116 = vector.broadcast %115 : f32 to vector<1x16x16xf32>
    %117 = arith.mulf %116, %114 : vector<1x16x16xf32>
    %118 = arith.addf %94, %117 : vector<1x16x16xf32>
    %c1_120 = arith.constant 1 : index
    %c0_121 = arith.constant 0 : index
    %c6_122 = arith.constant 6 : index
    %c0_123 = arith.constant 0 : index
    %119 = vector.load %arg5[%c1_120, %c0_121, %c6_122, %c0_123] : memref<7x1x22x16xf32, #tpu.memory_space<vmem>>, vector<1x1x16x16xf32>
    %120 = vector.shape_cast %119 : vector<1x1x16x16xf32> to vector<1x16x16xf32>
    %c43 = arith.constant 43 : index
    %121 = memref.load %arg2[%c43] : memref<49xf32, #tpu.memory_space<smem>>
    %122 = vector.broadcast %121 : f32 to vector<1x16x16xf32>
    %123 = arith.mulf %122, %120 : vector<1x16x16xf32>
    %124 = arith.addf %100, %123 : vector<1x16x16xf32>
    %c2_124 = arith.constant 2 : index
    %c0_125 = arith.constant 0 : index
    %c0_126 = arith.constant 0 : index
    %c0_127 = arith.constant 0 : index
    %125 = vector.load %arg5[%c2_124, %c0_125, %c0_126, %c0_127] : memref<7x1x22x16xf32, #tpu.memory_space<vmem>>, vector<1x1x16x16xf32>
    %126 = vector.shape_cast %125 : vector<1x1x16x16xf32> to vector<1x16x16xf32>
    %c2_128 = arith.constant 2 : index
    %127 = memref.load %arg2[%c2_128] : memref<49xf32, #tpu.memory_space<smem>>
    %128 = vector.broadcast %127 : f32 to vector<1x16x16xf32>
    %129 = arith.mulf %128, %126 : vector<1x16x16xf32>
    %130 = arith.addf %106, %129 : vector<1x16x16xf32>
    %c2_129 = arith.constant 2 : index
    %c0_130 = arith.constant 0 : index
    %c1_131 = arith.constant 1 : index
    %c0_132 = arith.constant 0 : index
    %131 = vector.load %arg5[%c2_129, %c0_130, %c1_131, %c0_132] : memref<7x1x22x16xf32, #tpu.memory_space<vmem>>, vector<1x1x16x16xf32>
    %132 = vector.shape_cast %131 : vector<1x1x16x16xf32> to vector<1x16x16xf32>
    %c9 = arith.constant 9 : index
    %133 = memref.load %arg2[%c9] : memref<49xf32, #tpu.memory_space<smem>>
    %134 = vector.broadcast %133 : f32 to vector<1x16x16xf32>
    %135 = arith.mulf %134, %132 : vector<1x16x16xf32>
    %136 = arith.addf %112, %135 : vector<1x16x16xf32>
    %c2_133 = arith.constant 2 : index
    %c0_134 = arith.constant 0 : index
    %c2_135 = arith.constant 2 : index
    %c0_136 = arith.constant 0 : index
    %137 = vector.load %arg5[%c2_133, %c0_134, %c2_135, %c0_136] : memref<7x1x22x16xf32, #tpu.memory_space<vmem>>, vector<1x1x16x16xf32>
    %138 = vector.shape_cast %137 : vector<1x1x16x16xf32> to vector<1x16x16xf32>
    %c16 = arith.constant 16 : index
    %139 = memref.load %arg2[%c16] : memref<49xf32, #tpu.memory_space<smem>>
    %140 = vector.broadcast %139 : f32 to vector<1x16x16xf32>
    %141 = arith.mulf %140, %138 : vector<1x16x16xf32>
    %142 = arith.addf %118, %141 : vector<1x16x16xf32>
    %c2_137 = arith.constant 2 : index
    %c0_138 = arith.constant 0 : index
    %c3_139 = arith.constant 3 : index
    %c0_140 = arith.constant 0 : index
    %143 = vector.load %arg5[%c2_137, %c0_138, %c3_139, %c0_140] : memref<7x1x22x16xf32, #tpu.memory_space<vmem>>, vector<1x1x16x16xf32>
    %144 = vector.shape_cast %143 : vector<1x1x16x16xf32> to vector<1x16x16xf32>
    %c23 = arith.constant 23 : index
    %145 = memref.load %arg2[%c23] : memref<49xf32, #tpu.memory_space<smem>>
    %146 = vector.broadcast %145 : f32 to vector<1x16x16xf32>
    %147 = arith.mulf %146, %144 : vector<1x16x16xf32>
    %148 = arith.addf %124, %147 : vector<1x16x16xf32>
    %c2_141 = arith.constant 2 : index
    %c0_142 = arith.constant 0 : index
    %c4_143 = arith.constant 4 : index
    %c0_144 = arith.constant 0 : index
    %149 = vector.load %arg5[%c2_141, %c0_142, %c4_143, %c0_144] : memref<7x1x22x16xf32, #tpu.memory_space<vmem>>, vector<1x1x16x16xf32>
    %150 = vector.shape_cast %149 : vector<1x1x16x16xf32> to vector<1x16x16xf32>
    %c30 = arith.constant 30 : index
    %151 = memref.load %arg2[%c30] : memref<49xf32, #tpu.memory_space<smem>>
    %152 = vector.broadcast %151 : f32 to vector<1x16x16xf32>
    %153 = arith.mulf %152, %150 : vector<1x16x16xf32>
    %154 = arith.addf %130, %153 : vector<1x16x16xf32>
    %c2_145 = arith.constant 2 : index
    %c0_146 = arith.constant 0 : index
    %c5_147 = arith.constant 5 : index
    %c0_148 = arith.constant 0 : index
    %155 = vector.load %arg5[%c2_145, %c0_146, %c5_147, %c0_148] : memref<7x1x22x16xf32, #tpu.memory_space<vmem>>, vector<1x1x16x16xf32>
    %156 = vector.shape_cast %155 : vector<1x1x16x16xf32> to vector<1x16x16xf32>
    %c37 = arith.constant 37 : index
    %157 = memref.load %arg2[%c37] : memref<49xf32, #tpu.memory_space<smem>>
    %158 = vector.broadcast %157 : f32 to vector<1x16x16xf32>
    %159 = arith.mulf %158, %156 : vector<1x16x16xf32>
    %160 = arith.addf %136, %159 : vector<1x16x16xf32>
    %c2_149 = arith.constant 2 : index
    %c0_150 = arith.constant 0 : index
    %c6_151 = arith.constant 6 : index
    %c0_152 = arith.constant 0 : index
    %161 = vector.load %arg5[%c2_149, %c0_150, %c6_151, %c0_152] : memref<7x1x22x16xf32, #tpu.memory_space<vmem>>, vector<1x1x16x16xf32>
    %162 = vector.shape_cast %161 : vector<1x1x16x16xf32> to vector<1x16x16xf32>
    %c44 = arith.constant 44 : index
    %163 = memref.load %arg2[%c44] : memref<49xf32, #tpu.memory_space<smem>>
    %164 = vector.broadcast %163 : f32 to vector<1x16x16xf32>
    %165 = arith.mulf %164, %162 : vector<1x16x16xf32>
    %166 = arith.addf %142, %165 : vector<1x16x16xf32>
    %c3_153 = arith.constant 3 : index
    %c0_154 = arith.constant 0 : index
    %c0_155 = arith.constant 0 : index
    %c0_156 = arith.constant 0 : index
    %167 = vector.load %arg5[%c3_153, %c0_154, %c0_155, %c0_156] : memref<7x1x22x16xf32, #tpu.memory_space<vmem>>, vector<1x1x16x16xf32>
    %168 = vector.shape_cast %167 : vector<1x1x16x16xf32> to vector<1x16x16xf32>
    %c3_157 = arith.constant 3 : index
    %169 = memref.load %arg2[%c3_157] : memref<49xf32, #tpu.memory_space<smem>>
    %170 = vector.broadcast %169 : f32 to vector<1x16x16xf32>
    %171 = arith.mulf %170, %168 : vector<1x16x16xf32>
    %172 = arith.addf %148, %171 : vector<1x16x16xf32>
    %c3_158 = arith.constant 3 : index
    %c0_159 = arith.constant 0 : index
    %c1_160 = arith.constant 1 : index
    %c0_161 = arith.constant 0 : index
    %173 = vector.load %arg5[%c3_158, %c0_159, %c1_160, %c0_161] : memref<7x1x22x16xf32, #tpu.memory_space<vmem>>, vector<1x1x16x16xf32>
    %174 = vector.shape_cast %173 : vector<1x1x16x16xf32> to vector<1x16x16xf32>
    %c10 = arith.constant 10 : index
    %175 = memref.load %arg2[%c10] : memref<49xf32, #tpu.memory_space<smem>>
    %176 = vector.broadcast %175 : f32 to vector<1x16x16xf32>
    %177 = arith.mulf %176, %174 : vector<1x16x16xf32>
    %178 = arith.addf %154, %177 : vector<1x16x16xf32>
    %c3_162 = arith.constant 3 : index
    %c0_163 = arith.constant 0 : index
    %c2_164 = arith.constant 2 : index
    %c0_165 = arith.constant 0 : index
    %179 = vector.load %arg5[%c3_162, %c0_163, %c2_164, %c0_165] : memref<7x1x22x16xf32, #tpu.memory_space<vmem>>, vector<1x1x16x16xf32>
    %180 = vector.shape_cast %179 : vector<1x1x16x16xf32> to vector<1x16x16xf32>
    %c17 = arith.constant 17 : index
    %181 = memref.load %arg2[%c17] : memref<49xf32, #tpu.memory_space<smem>>
    %182 = vector.broadcast %181 : f32 to vector<1x16x16xf32>
    %183 = arith.mulf %182, %180 : vector<1x16x16xf32>
    %184 = arith.addf %160, %183 : vector<1x16x16xf32>
    %c3_166 = arith.constant 3 : index
    %c0_167 = arith.constant 0 : index
    %c3_168 = arith.constant 3 : index
    %c0_169 = arith.constant 0 : index
    %185 = vector.load %arg5[%c3_166, %c0_167, %c3_168, %c0_169] : memref<7x1x22x16xf32, #tpu.memory_space<vmem>>, vector<1x1x16x16xf32>
    %186 = vector.shape_cast %185 : vector<1x1x16x16xf32> to vector<1x16x16xf32>
    %c24 = arith.constant 24 : index
    %187 = memref.load %arg2[%c24] : memref<49xf32, #tpu.memory_space<smem>>
    %188 = vector.broadcast %187 : f32 to vector<1x16x16xf32>
    %189 = arith.mulf %188, %186 : vector<1x16x16xf32>
    %190 = arith.addf %166, %189 : vector<1x16x16xf32>
    %c3_170 = arith.constant 3 : index
    %c0_171 = arith.constant 0 : index
    %c4_172 = arith.constant 4 : index
    %c0_173 = arith.constant 0 : index
    %191 = vector.load %arg5[%c3_170, %c0_171, %c4_172, %c0_173] : memref<7x1x22x16xf32, #tpu.memory_space<vmem>>, vector<1x1x16x16xf32>
    %192 = vector.shape_cast %191 : vector<1x1x16x16xf32> to vector<1x16x16xf32>
    %c31 = arith.constant 31 : index
    %193 = memref.load %arg2[%c31] : memref<49xf32, #tpu.memory_space<smem>>
    %194 = vector.broadcast %193 : f32 to vector<1x16x16xf32>
    %195 = arith.mulf %194, %192 : vector<1x16x16xf32>
    %196 = arith.addf %172, %195 : vector<1x16x16xf32>
    %c3_174 = arith.constant 3 : index
    %c0_175 = arith.constant 0 : index
    %c5_176 = arith.constant 5 : index
    %c0_177 = arith.constant 0 : index
    %197 = vector.load %arg5[%c3_174, %c0_175, %c5_176, %c0_177] : memref<7x1x22x16xf32, #tpu.memory_space<vmem>>, vector<1x1x16x16xf32>
    %198 = vector.shape_cast %197 : vector<1x1x16x16xf32> to vector<1x16x16xf32>
    %c38 = arith.constant 38 : index
    %199 = memref.load %arg2[%c38] : memref<49xf32, #tpu.memory_space<smem>>
    %200 = vector.broadcast %199 : f32 to vector<1x16x16xf32>
    %201 = arith.mulf %200, %198 : vector<1x16x16xf32>
    %202 = arith.addf %178, %201 : vector<1x16x16xf32>
    %c3_178 = arith.constant 3 : index
    %c0_179 = arith.constant 0 : index
    %c6_180 = arith.constant 6 : index
    %c0_181 = arith.constant 0 : index
    %203 = vector.load %arg5[%c3_178, %c0_179, %c6_180, %c0_181] : memref<7x1x22x16xf32, #tpu.memory_space<vmem>>, vector<1x1x16x16xf32>
    %204 = vector.shape_cast %203 : vector<1x1x16x16xf32> to vector<1x16x16xf32>
    %c45 = arith.constant 45 : index
    %205 = memref.load %arg2[%c45] : memref<49xf32, #tpu.memory_space<smem>>
    %206 = vector.broadcast %205 : f32 to vector<1x16x16xf32>
    %207 = arith.mulf %206, %204 : vector<1x16x16xf32>
    %208 = arith.addf %184, %207 : vector<1x16x16xf32>
    %c4_182 = arith.constant 4 : index
    %c0_183 = arith.constant 0 : index
    %c0_184 = arith.constant 0 : index
    %c0_185 = arith.constant 0 : index
    %209 = vector.load %arg5[%c4_182, %c0_183, %c0_184, %c0_185] : memref<7x1x22x16xf32, #tpu.memory_space<vmem>>, vector<1x1x16x16xf32>
    %210 = vector.shape_cast %209 : vector<1x1x16x16xf32> to vector<1x16x16xf32>
    %c4_186 = arith.constant 4 : index
    %211 = memref.load %arg2[%c4_186] : memref<49xf32, #tpu.memory_space<smem>>
    %212 = vector.broadcast %211 : f32 to vector<1x16x16xf32>
    %213 = arith.mulf %212, %210 : vector<1x16x16xf32>
    %214 = arith.addf %190, %213 : vector<1x16x16xf32>
    %c4_187 = arith.constant 4 : index
    %c0_188 = arith.constant 0 : index
    %c1_189 = arith.constant 1 : index
    %c0_190 = arith.constant 0 : index
    %215 = vector.load %arg5[%c4_187, %c0_188, %c1_189, %c0_190] : memref<7x1x22x16xf32, #tpu.memory_space<vmem>>, vector<1x1x16x16xf32>
    %216 = vector.shape_cast %215 : vector<1x1x16x16xf32> to vector<1x16x16xf32>
    %c11 = arith.constant 11 : index
    %217 = memref.load %arg2[%c11] : memref<49xf32, #tpu.memory_space<smem>>
    %218 = vector.broadcast %217 : f32 to vector<1x16x16xf32>
    %219 = arith.mulf %218, %216 : vector<1x16x16xf32>
    %220 = arith.addf %196, %219 : vector<1x16x16xf32>
    %c4_191 = arith.constant 4 : index
    %c0_192 = arith.constant 0 : index
    %c2_193 = arith.constant 2 : index
    %c0_194 = arith.constant 0 : index
    %221 = vector.load %arg5[%c4_191, %c0_192, %c2_193, %c0_194] : memref<7x1x22x16xf32, #tpu.memory_space<vmem>>, vector<1x1x16x16xf32>
    %222 = vector.shape_cast %221 : vector<1x1x16x16xf32> to vector<1x16x16xf32>
    %c18 = arith.constant 18 : index
    %223 = memref.load %arg2[%c18] : memref<49xf32, #tpu.memory_space<smem>>
    %224 = vector.broadcast %223 : f32 to vector<1x16x16xf32>
    %225 = arith.mulf %224, %222 : vector<1x16x16xf32>
    %226 = arith.addf %202, %225 : vector<1x16x16xf32>
    %c4_195 = arith.constant 4 : index
    %c0_196 = arith.constant 0 : index
    %c3_197 = arith.constant 3 : index
    %c0_198 = arith.constant 0 : index
    %227 = vector.load %arg5[%c4_195, %c0_196, %c3_197, %c0_198] : memref<7x1x22x16xf32, #tpu.memory_space<vmem>>, vector<1x1x16x16xf32>
    %228 = vector.shape_cast %227 : vector<1x1x16x16xf32> to vector<1x16x16xf32>
    %c25 = arith.constant 25 : index
    %229 = memref.load %arg2[%c25] : memref<49xf32, #tpu.memory_space<smem>>
    %230 = vector.broadcast %229 : f32 to vector<1x16x16xf32>
    %231 = arith.mulf %230, %228 : vector<1x16x16xf32>
    %232 = arith.addf %208, %231 : vector<1x16x16xf32>
    %c4_199 = arith.constant 4 : index
    %c0_200 = arith.constant 0 : index
    %c4_201 = arith.constant 4 : index
    %c0_202 = arith.constant 0 : index
    %233 = vector.load %arg5[%c4_199, %c0_200, %c4_201, %c0_202] : memref<7x1x22x16xf32, #tpu.memory_space<vmem>>, vector<1x1x16x16xf32>
    %234 = vector.shape_cast %233 : vector<1x1x16x16xf32> to vector<1x16x16xf32>
    %c32 = arith.constant 32 : index
    %235 = memref.load %arg2[%c32] : memref<49xf32, #tpu.memory_space<smem>>
    %236 = vector.broadcast %235 : f32 to vector<1x16x16xf32>
    %237 = arith.mulf %236, %234 : vector<1x16x16xf32>
    %238 = arith.addf %214, %237 : vector<1x16x16xf32>
    %c4_203 = arith.constant 4 : index
    %c0_204 = arith.constant 0 : index
    %c5_205 = arith.constant 5 : index
    %c0_206 = arith.constant 0 : index
    %239 = vector.load %arg5[%c4_203, %c0_204, %c5_205, %c0_206] : memref<7x1x22x16xf32, #tpu.memory_space<vmem>>, vector<1x1x16x16xf32>
    %240 = vector.shape_cast %239 : vector<1x1x16x16xf32> to vector<1x16x16xf32>
    %c39 = arith.constant 39 : index
    %241 = memref.load %arg2[%c39] : memref<49xf32, #tpu.memory_space<smem>>
    %242 = vector.broadcast %241 : f32 to vector<1x16x16xf32>
    %243 = arith.mulf %242, %240 : vector<1x16x16xf32>
    %244 = arith.addf %220, %243 : vector<1x16x16xf32>
    %c4_207 = arith.constant 4 : index
    %c0_208 = arith.constant 0 : index
    %c6_209 = arith.constant 6 : index
    %c0_210 = arith.constant 0 : index
    %245 = vector.load %arg5[%c4_207, %c0_208, %c6_209, %c0_210] : memref<7x1x22x16xf32, #tpu.memory_space<vmem>>, vector<1x1x16x16xf32>
    %246 = vector.shape_cast %245 : vector<1x1x16x16xf32> to vector<1x16x16xf32>
    %c46 = arith.constant 46 : index
    %247 = memref.load %arg2[%c46] : memref<49xf32, #tpu.memory_space<smem>>
    %248 = vector.broadcast %247 : f32 to vector<1x16x16xf32>
    %249 = arith.mulf %248, %246 : vector<1x16x16xf32>
    %250 = arith.addf %226, %249 : vector<1x16x16xf32>
    %c5_211 = arith.constant 5 : index
    %c0_212 = arith.constant 0 : index
    %c0_213 = arith.constant 0 : index
    %c0_214 = arith.constant 0 : index
    %251 = vector.load %arg5[%c5_211, %c0_212, %c0_213, %c0_214] : memref<7x1x22x16xf32, #tpu.memory_space<vmem>>, vector<1x1x16x16xf32>
    %252 = vector.shape_cast %251 : vector<1x1x16x16xf32> to vector<1x16x16xf32>
    %c5_215 = arith.constant 5 : index
    %253 = memref.load %arg2[%c5_215] : memref<49xf32, #tpu.memory_space<smem>>
    %254 = vector.broadcast %253 : f32 to vector<1x16x16xf32>
    %255 = arith.mulf %254, %252 : vector<1x16x16xf32>
    %256 = arith.addf %232, %255 : vector<1x16x16xf32>
    %c5_216 = arith.constant 5 : index
    %c0_217 = arith.constant 0 : index
    %c1_218 = arith.constant 1 : index
    %c0_219 = arith.constant 0 : index
    %257 = vector.load %arg5[%c5_216, %c0_217, %c1_218, %c0_219] : memref<7x1x22x16xf32, #tpu.memory_space<vmem>>, vector<1x1x16x16xf32>
    %258 = vector.shape_cast %257 : vector<1x1x16x16xf32> to vector<1x16x16xf32>
    %c12 = arith.constant 12 : index
    %259 = memref.load %arg2[%c12] : memref<49xf32, #tpu.memory_space<smem>>
    %260 = vector.broadcast %259 : f32 to vector<1x16x16xf32>
    %261 = arith.mulf %260, %258 : vector<1x16x16xf32>
    %262 = arith.addf %238, %261 : vector<1x16x16xf32>
    %c5_220 = arith.constant 5 : index
    %c0_221 = arith.constant 0 : index
    %c2_222 = arith.constant 2 : index
    %c0_223 = arith.constant 0 : index
    %263 = vector.load %arg5[%c5_220, %c0_221, %c2_222, %c0_223] : memref<7x1x22x16xf32, #tpu.memory_space<vmem>>, vector<1x1x16x16xf32>
    %264 = vector.shape_cast %263 : vector<1x1x16x16xf32> to vector<1x16x16xf32>
    %c19_224 = arith.constant 19 : index
    %265 = memref.load %arg2[%c19_224] : memref<49xf32, #tpu.memory_space<smem>>
    %266 = vector.broadcast %265 : f32 to vector<1x16x16xf32>
    %267 = arith.mulf %266, %264 : vector<1x16x16xf32>
    %268 = arith.addf %244, %267 : vector<1x16x16xf32>
    %c5_225 = arith.constant 5 : index
    %c0_226 = arith.constant 0 : index
    %c3_227 = arith.constant 3 : index
    %c0_228 = arith.constant 0 : index
    %269 = vector.load %arg5[%c5_225, %c0_226, %c3_227, %c0_228] : memref<7x1x22x16xf32, #tpu.memory_space<vmem>>, vector<1x1x16x16xf32>
    %270 = vector.shape_cast %269 : vector<1x1x16x16xf32> to vector<1x16x16xf32>
    %c26 = arith.constant 26 : index
    %271 = memref.load %arg2[%c26] : memref<49xf32, #tpu.memory_space<smem>>
    %272 = vector.broadcast %271 : f32 to vector<1x16x16xf32>
    %273 = arith.mulf %272, %270 : vector<1x16x16xf32>
    %274 = arith.addf %250, %273 : vector<1x16x16xf32>
    %c5_229 = arith.constant 5 : index
    %c0_230 = arith.constant 0 : index
    %c4_231 = arith.constant 4 : index
    %c0_232 = arith.constant 0 : index
    %275 = vector.load %arg5[%c5_229, %c0_230, %c4_231, %c0_232] : memref<7x1x22x16xf32, #tpu.memory_space<vmem>>, vector<1x1x16x16xf32>
    %276 = vector.shape_cast %275 : vector<1x1x16x16xf32> to vector<1x16x16xf32>
    %c33 = arith.constant 33 : index
    %277 = memref.load %arg2[%c33] : memref<49xf32, #tpu.memory_space<smem>>
    %278 = vector.broadcast %277 : f32 to vector<1x16x16xf32>
    %279 = arith.mulf %278, %276 : vector<1x16x16xf32>
    %280 = arith.addf %256, %279 : vector<1x16x16xf32>
    %c5_233 = arith.constant 5 : index
    %c0_234 = arith.constant 0 : index
    %c5_235 = arith.constant 5 : index
    %c0_236 = arith.constant 0 : index
    %281 = vector.load %arg5[%c5_233, %c0_234, %c5_235, %c0_236] : memref<7x1x22x16xf32, #tpu.memory_space<vmem>>, vector<1x1x16x16xf32>
    %282 = vector.shape_cast %281 : vector<1x1x16x16xf32> to vector<1x16x16xf32>
    %c40 = arith.constant 40 : index
    %283 = memref.load %arg2[%c40] : memref<49xf32, #tpu.memory_space<smem>>
    %284 = vector.broadcast %283 : f32 to vector<1x16x16xf32>
    %285 = arith.mulf %284, %282 : vector<1x16x16xf32>
    %286 = arith.addf %262, %285 : vector<1x16x16xf32>
    %c5_237 = arith.constant 5 : index
    %c0_238 = arith.constant 0 : index
    %c6_239 = arith.constant 6 : index
    %c0_240 = arith.constant 0 : index
    %287 = vector.load %arg5[%c5_237, %c0_238, %c6_239, %c0_240] : memref<7x1x22x16xf32, #tpu.memory_space<vmem>>, vector<1x1x16x16xf32>
    %288 = vector.shape_cast %287 : vector<1x1x16x16xf32> to vector<1x16x16xf32>
    %c47 = arith.constant 47 : index
    %289 = memref.load %arg2[%c47] : memref<49xf32, #tpu.memory_space<smem>>
    %290 = vector.broadcast %289 : f32 to vector<1x16x16xf32>
    %291 = arith.mulf %290, %288 : vector<1x16x16xf32>
    %292 = arith.addf %268, %291 : vector<1x16x16xf32>
    %c6_241 = arith.constant 6 : index
    %c0_242 = arith.constant 0 : index
    %c0_243 = arith.constant 0 : index
    %c0_244 = arith.constant 0 : index
    %293 = vector.load %arg5[%c6_241, %c0_242, %c0_243, %c0_244] : memref<7x1x22x16xf32, #tpu.memory_space<vmem>>, vector<1x1x16x16xf32>
    %294 = vector.shape_cast %293 : vector<1x1x16x16xf32> to vector<1x16x16xf32>
    %c6_245 = arith.constant 6 : index
    %295 = memref.load %arg2[%c6_245] : memref<49xf32, #tpu.memory_space<smem>>
    %296 = vector.broadcast %295 : f32 to vector<1x16x16xf32>
    %297 = arith.mulf %296, %294 : vector<1x16x16xf32>
    %298 = arith.addf %274, %297 : vector<1x16x16xf32>
    %c6_246 = arith.constant 6 : index
    %c0_247 = arith.constant 0 : index
    %c1_248 = arith.constant 1 : index
    %c0_249 = arith.constant 0 : index
    %299 = vector.load %arg5[%c6_246, %c0_247, %c1_248, %c0_249] : memref<7x1x22x16xf32, #tpu.memory_space<vmem>>, vector<1x1x16x16xf32>
    %300 = vector.shape_cast %299 : vector<1x1x16x16xf32> to vector<1x16x16xf32>
    %c13 = arith.constant 13 : index
    %301 = memref.load %arg2[%c13] : memref<49xf32, #tpu.memory_space<smem>>
    %302 = vector.broadcast %301 : f32 to vector<1x16x16xf32>
    %303 = arith.mulf %302, %300 : vector<1x16x16xf32>
    %304 = arith.addf %280, %303 : vector<1x16x16xf32>
    %c6_250 = arith.constant 6 : index
    %c0_251 = arith.constant 0 : index
    %c2_252 = arith.constant 2 : index
    %c0_253 = arith.constant 0 : index
    %305 = vector.load %arg5[%c6_250, %c0_251, %c2_252, %c0_253] : memref<7x1x22x16xf32, #tpu.memory_space<vmem>>, vector<1x1x16x16xf32>
    %306 = vector.shape_cast %305 : vector<1x1x16x16xf32> to vector<1x16x16xf32>
    %c20 = arith.constant 20 : index
    %307 = memref.load %arg2[%c20] : memref<49xf32, #tpu.memory_space<smem>>
    %308 = vector.broadcast %307 : f32 to vector<1x16x16xf32>
    %309 = arith.mulf %308, %306 : vector<1x16x16xf32>
    %310 = arith.addf %286, %309 : vector<1x16x16xf32>
    %c6_254 = arith.constant 6 : index
    %c0_255 = arith.constant 0 : index
    %c3_256 = arith.constant 3 : index
    %c0_257 = arith.constant 0 : index
    %311 = vector.load %arg5[%c6_254, %c0_255, %c3_256, %c0_257] : memref<7x1x22x16xf32, #tpu.memory_space<vmem>>, vector<1x1x16x16xf32>
    %312 = vector.shape_cast %311 : vector<1x1x16x16xf32> to vector<1x16x16xf32>
    %c27 = arith.constant 27 : index
    %313 = memref.load %arg2[%c27] : memref<49xf32, #tpu.memory_space<smem>>
    %314 = vector.broadcast %313 : f32 to vector<1x16x16xf32>
    %315 = arith.mulf %314, %312 : vector<1x16x16xf32>
    %316 = arith.addf %292, %315 : vector<1x16x16xf32>
    %c6_258 = arith.constant 6 : index
    %c0_259 = arith.constant 0 : index
    %c4_260 = arith.constant 4 : index
    %c0_261 = arith.constant 0 : index
    %317 = vector.load %arg5[%c6_258, %c0_259, %c4_260, %c0_261] : memref<7x1x22x16xf32, #tpu.memory_space<vmem>>, vector<1x1x16x16xf32>
    %318 = vector.shape_cast %317 : vector<1x1x16x16xf32> to vector<1x16x16xf32>
    %c34 = arith.constant 34 : index
    %319 = memref.load %arg2[%c34] : memref<49xf32, #tpu.memory_space<smem>>
    %320 = vector.broadcast %319 : f32 to vector<1x16x16xf32>
    %321 = arith.mulf %320, %318 : vector<1x16x16xf32>
    %322 = arith.addf %298, %321 : vector<1x16x16xf32>
    %c6_262 = arith.constant 6 : index
    %c0_263 = arith.constant 0 : index
    %c5_264 = arith.constant 5 : index
    %c0_265 = arith.constant 0 : index
    %323 = vector.load %arg5[%c6_262, %c0_263, %c5_264, %c0_265] : memref<7x1x22x16xf32, #tpu.memory_space<vmem>>, vector<1x1x16x16xf32>
    %324 = vector.shape_cast %323 : vector<1x1x16x16xf32> to vector<1x16x16xf32>
    %c41 = arith.constant 41 : index
    %325 = memref.load %arg2[%c41] : memref<49xf32, #tpu.memory_space<smem>>
    %326 = vector.broadcast %325 : f32 to vector<1x16x16xf32>
    %327 = arith.mulf %326, %324 : vector<1x16x16xf32>
    %328 = arith.addf %304, %327 : vector<1x16x16xf32>
    %c6_266 = arith.constant 6 : index
    %c0_267 = arith.constant 0 : index
    %c6_268 = arith.constant 6 : index
    %c0_269 = arith.constant 0 : index
    %329 = vector.load %arg5[%c6_266, %c0_267, %c6_268, %c0_269] : memref<7x1x22x16xf32, #tpu.memory_space<vmem>>, vector<1x1x16x16xf32>
    %330 = vector.shape_cast %329 : vector<1x1x16x16xf32> to vector<1x16x16xf32>
    %c48 = arith.constant 48 : index
    %331 = memref.load %arg2[%c48] : memref<49xf32, #tpu.memory_space<smem>>
    %332 = vector.broadcast %331 : f32 to vector<1x16x16xf32>
    %333 = arith.mulf %332, %330 : vector<1x16x16xf32>
    %334 = arith.addf %310, %333 : vector<1x16x16xf32>
    %335 = arith.addf %334, %316 : vector<1x16x16xf32>
    %336 = arith.addf %322, %328 : vector<1x16x16xf32>
    %337 = arith.addf %335, %336 : vector<1x16x16xf32>
    %338 = arith.negf %337 : vector<1x16x16xf32>
    %339 = math.exp %338 : vector<1x16x16xf32>
    %cst_270 = arith.constant 1.000000e+00 : f32
    %340 = vector.broadcast %cst_270 : f32 to vector<1x16x16xf32>
    %341 = arith.addf %340, %339 : vector<1x16x16xf32>
    %342 = arith.divf %340, %341 : vector<1x16x16xf32>
    %c0_271 = arith.constant 0 : index
    %c0_272 = arith.constant 0 : index
    %c0_273 = arith.constant 0 : index
    %c0_274 = arith.constant 0 : index
    %343 = vector.load %arg3[%c0_271, %c0_272, %c0_273, %c0_274] : memref<1x1x16x16xf32, #tpu.memory_space<vmem>>, vector<1x1x16x16xf32>
    %344 = vector.shape_cast %343 : vector<1x1x16x16xf32> to vector<1x16x16xf32>
    %345 = vector.shape_cast %342 : vector<1x16x16xf32> to vector<1x1x16x16xf32>
    tpu.vector_store %arg3[%c0_271, %c0_272, %c0_273, %c0_274], %345 {strides = array<i32>} : memref<1x1x16x16xf32, #tpu.memory_space<vmem>>, vector<1x1x16x16xf32>,
    return
  }
  func.func @transform_0(%arg0: i32) -> (i32, i32, i32, i32) {
    %c0_i32 = arith.constant 0 : i32
    %c0_i32_0 = arith.constant 0 : i32
    %c0_i32_1 = arith.constant 0 : i32
    %c0_i32_2 = arith.constant 0 : i32
    return %arg0, %c0_i32, %c0_i32_0, %c0_i32_1 : i32, i32, i32, i32
  }
  func.func @transform_1(%arg0: i32) -> i32 {
    %c0_i32 = arith.constant 0 : i32
    %c0_i32_0 = arith.constant 0 : i32
    return %c0_i32 : i32
  }
  func.func @transform_2(%arg0: i32) -> (i32, i32, i32, i32) {
    %c0_i32 = arith.constant 0 : i32
    %c0_i32_0 = arith.constant 0 : i32
    %c0_i32_1 = arith.constant 0 : i32
    %c0_i32_2 = arith.constant 0 : i32
    return %arg0, %c0_i32, %c0_i32_0, %c0_i32_1 : i32, i32, i32, i32
  }
}

</mosaic_0001>

<llo_original>
// kernel: tpu_custom_call.1
$region0: #{tpu_custom_call.1}
  #allocation0 [shape = 'u32[]', space=smem, size = 0x4, offset = 0x4, fixed_abs, tag = 'smem constant byte address 0x4 - core index']
  #allocation1 [shape = 'u32[144,128]{1,0:T(1,128)}', space=vmem, size = 0x12000, scoped, tag = 'internal scratch']
  #allocation2 [shape = 'f32[1,22,22]{2,1,0:T(8,128)}', space=vmem, size = 0x3000, scoped, tag = 'scratch operand']
  #allocation3 [shape = 'f32[7,1,22,16]{3,2,1,0:T(8,128)}', space=vmem, size = 0x15000, scoped, tag = 'scratch operand']
  %s0 = inlined_call_operand.hbm [shape: f32[2,4,16,16], index: 0, kind: input, shape index: {}]
  %s1 = inlined_call_operand.vmem [shape: f32[49], index: 1, kind: input, shape index: {}]
  %s2 = inlined_call_operand.hbm [shape: f32[2,1,16,16], index: 2, kind: output, shape index: {}]
  %s3 = sld [smem:[#allocation0]]
  $region49: #{tpu_custom_call.1} parent=0
    _
  %s5 = ssub.s32 1, %s3
  %s6 = scalar_select 0, %s5, %s3
  $region1: #{tpu_custom_call.1} parent=0
    #allocation4 [shape = 'u8[65536]{0}', space=vmem, size = 0x10000, scoped, tag = 'input window, operand 0']
    #allocation5 [shape = 's32[2]{0}', space=sflag, size = 0x8, scoped, tag = 'scoped memory for tpu_custom_call.1']
    #allocation6 [shape = 's32[2]{0}', space=sflag, size = 0x8, scoped, tag = 'scoped memory for tpu_custom_call.1']
    #allocation7 [shape = 's32[2]{0}', space=sflag, size = 0x8, scoped, tag = 'scoped memory for tpu_custom_call.1']
    #allocation8 [shape = 'u8[512]{0}', space=smem, size = 0x200, scoped, tag = 'input window, operand 1, single buffered']
    #allocation9 [shape = 'u8[16384]{0}', space=vmem, size = 0x4000, scoped, tag = 'output window, operand 0']
    %7 = vsyncpa [#allocation5], 0
    %s8 = scalar_lea.sflag [#allocation5], 1
    %9 = vsyncpa %s8, 0
    %10 = vsyncpa [#allocation7], 0
    %11 = vsyncpa [#allocation6], 0
    %s12 = scalar_lea.sflag [#allocation6], 1
    %13 = vsyncpa %s12, 0
    loop: start=0, step=1, limit=4
    $region2: #{tpu_custom_call.1} parent=1 // loop_pre_header
      _
    $region3: #{tpu_custom_call.1} parent=1 // loop_header
      %s15 = sphi 0, %s19
      %p16 = scmp.ge.s32.totalorder %s15, 4
      %s25 = sphi 0, %s27
      %s28 = sphi 0, %s25
      %s29 = sphi 0, %s28
      %s45 = sphi 0, %s29
      %s49 = sphi 0, %s49
      %s51 = sphi 0, %s49
      %s52 = sphi 0, %s51
      %s66 = sphi 0, %s52
      %s72 = sphi 0, %s74
      %s75 = sphi 0, %s72
      %s76 = sphi 0, %s75
      %s92 = sphi 0, %s76
    $region4: #{tpu_custom_call.1} parent=1 // loop_header_branch
      %18 = sbr.rel (%p16) target = $region8
    $region5: #{tpu_custom_call.1} parent=1 // loop_body
      %s20 = ssub.s32 %s15, 1
      %s21 = ssub.s32 %s15, 2
      %s22 = sadd.s32 %s15, 1
      %s23 = ssub.s32 %s15, %s22
      %p24 = scmp.eq.s32.totalorder %s23, 0
      %s26 = sadd.s32 %s25, 1
      %s27 = scalar_select %p24, %s25, %s26
      %p30 = pneg %p24
      %p31 = scmp.eq.s32.totalorder %s15, 1
      %p32 = por %p30, %p31
      %p33 = scmp.ne.s32.totalorder %s25, %s28
      %p34 = scmp.eq.s32.totalorder %s15, 0
      %p35 = por %p33, %p34
      %p36 = scmp.ne.s32.totalorder %s25, %s28
      %p37 = scmp.eq.s32.totalorder %s20, 1
      %p38 = por %p36, %p37
      %p39 = scmp.ne.s32.totalorder %s28, %s29
      %p40 = scmp.eq.s32.totalorder %s20, 0
      %p41 = por %p39, %p40
      %p42 = scmp.ne.s32.totalorder %s28, %s29
      %p43 = scmp.eq.s32.totalorder %s21, 1
      %p44 = por %p42, %p43
      %p46 = scmp.ne.s32.totalorder %s29, %s45
      %p47 = scmp.eq.s32.totalorder %s21, 0
      %p48 = por %p46, %p47
      %s50 = sadd.s32 %s49, 1
      %p53 = scmp.eq.s32.totalorder %s15, 1
      %p54 = scmp.ne.s32.totalorder %s49, %s51
      %p55 = scmp.eq.s32.totalorder %s15, 0
      %p56 = por %p54, %p55
      %p57 = scmp.ne.s32.totalorder %s49, %s51
      %p58 = scmp.eq.s32.totalorder %s20, 1
      %p59 = por %p57, %p58
      %p60 = scmp.ne.s32.totalorder %s51, %s52
      %p61 = scmp.eq.s32.totalorder %s20, 0
      %p62 = por %p60, %p61
      %p63 = scmp.ne.s32.totalorder %s51, %s52
      %p64 = scmp.eq.s32.totalorder %s21, 1
      %p65 = por %p63, %p64
      %p67 = scmp.ne.s32.totalorder %s52, %s66
      %p68 = scmp.eq.s32.totalorder %s21, 0
      %p69 = por %p67, %p68
      %s70 = ssub.s32 %s15, %s22
      %p71 = scmp.eq.s32.totalorder %s70, 0
      %s73 = sadd.s32 %s72, 1
      %s74 = scalar_select %p71, %s72, %s73
      %p77 = pneg %p71
      %p78 = scmp.eq.s32.totalorder %s15, 1
      %p79 = por %p77, %p78
      %p80 = scmp.ne.s32.totalorder %s72, %s75
      %p81 = scmp.eq.s32.totalorder %s15, 0
      %p82 = por %p80, %p81
      %p83 = scmp.ne.s32.totalorder %s72, %s75
      %p84 = scmp.eq.s32.totalorder %s20, 1
      %p85 = por %p83, %p84
      %p86 = scmp.ne.s32.totalorder %s75, %s76
      %p87 = scmp.eq.s32.totalorder %s20, 0
      %p88 = por %p86, %p87
      %p89 = scmp.ne.s32.totalorder %s75, %s76
      %p90 = scmp.eq.s32.totalorder %s21, 1
      %p91 = por %p89, %p90
      %p93 = scmp.ne.s32.totalorder %s76, %s92
      %p94 = scmp.eq.s32.totalorder %s21, 0
      %p95 = por %p93, %p94
      %p96 = scmp.le.s32.totalorder 1, %s15
      %p97 = scmp.lt.s32.totalorder %s15, 3
      %p98 = pnand %p96, %p97
      %p99 = pneg %p98
      // Predicated region
      $region9: #{tpu_custom_call.1} parent=5 // pred_check
        _
      $region10: #{tpu_custom_call.1} parent=5 // pred_check_branch
        %101 = sbr.rel (%p98) target = $region12
      $region11: #{tpu_custom_call.1} parent=5 // pred_region
        %s102 = ssub.s32 %s15, 1
        // Predicated region
        $region13: #{tpu_custom_call.1} parent=11 // pred_check
          %p103 = pneg %p62
        $region14: #{tpu_custom_call.1} parent=11 // pred_check_branch
          %105 = sbr.rel (%p103) target = $region16
        $region15: #{tpu_custom_call.1} parent=11 // pred_region
          %s107 = ssub.s32 16, 16
          %108 = vsyncadd [#allocation7], %s107
          %s110 = sshll.u32 %s1, 4
          %s111 = int_to_ptr.vmem [resolvable:$true] %s110
          %113 = dma.vmem_to_smem %s111, 16, [#allocation8], [#allocation7]
        $region16: #{tpu_custom_call.1} parent=11 // pred_fallthru
          _
      $region12: #{tpu_custom_call.1} parent=5 // pred_fallthru
        _
      %p114 = scmp.lt.s32.totalorder %s15, 2
      // Predicated region
      $region17: #{tpu_custom_call.1} parent=5 // pred_check
        %p115 = pneg %p114
      $region18: #{tpu_custom_call.1} parent=5 // pred_check_branch
        %117 = sbr.rel (%p115) target = $region20
      $region19: #{tpu_custom_call.1} parent=5 // pred_region
        // Predicated region
        $region21: #{tpu_custom_call.1} parent=19 // pred_check
          %p118 = pneg %p35
        $region22: #{tpu_custom_call.1} parent=19 // pred_check_branch
          %120 = sbr.rel (%p118) target = $region24
        $region23: #{tpu_custom_call.1} parent=19 // pred_region
          %s121 = sand.u32 %s25, 1
          %s122 = scalar_lea.sflag [#allocation5], %s121
          %s123 = sand.u32 %s25, 1
          %s124 = smul.addr %s123, 64
          %s125 = scalar_lea.vmem [#allocation4], %s124
          %s127 = ssub.s32 1024, 1024
          %128 = vsyncadd %s122, %s127
          %s129 = smul.addr %s15, 8
          %s130 = smul.addr %s129, 128
          %s131 = scalar_lea.hbm %s0, %s130
          %s132 = sshll.u32 %s125, 4
          %s133 = int_to_ptr.vmem [resolvable:$true] %s132
          %138 = dma.hbm_to_vmem [thread:$0]  %s131, 1024, %s133, %s122, 128, 128, 8
        $region24: #{tpu_custom_call.1} parent=19 // pred_fallthru
          _
      $region20: #{tpu_custom_call.1} parent=5 // pred_fallthru
        _
      %p139 = scmp.le.s32.totalorder 1, %s15
      %p140 = scmp.lt.s32.totalorder %s15, 3
      %p141 = pnand %p139, %p140
      %p142 = pneg %p141
      // Predicated region
      $region25: #{tpu_custom_call.1} parent=5 // pred_check
        _
      $region26: #{tpu_custom_call.1} parent=5 // pred_check_branch
        %144 = sbr.rel (%p141) target = $region28
      $region27: #{tpu_custom_call.1} parent=5 // pred_region
        %s145 = ssub.s32 %s15, 1
        %s146 = sand.u32 %s28, 1
        %s147 = scalar_lea.sflag [#allocation5], %s146
        %s148 = sand.u32 %s28, 1
        %s149 = smul.addr %s148, 64
        %s150 = scalar_lea.vmem [#allocation4], %s149
        // Predicated region
        $region29: #{tpu_custom_call.1} parent=27 // pred_check
          %p151 = pneg %p41
        $region30: #{tpu_custom_call.1} parent=27 // pred_check_branch
          %153 = sbr.rel (%p151) target = $region32
        $region31: #{tpu_custom_call.1} parent=27 // pred_region
          %154 = dma.done %s147, 1024
        $region32: #{tpu_custom_call.1} parent=27 // pred_fallthru
          _
        // Predicated region
        $region33: #{tpu_custom_call.1} parent=27 // pred_check
          %p155 = pneg %p62
        $region34: #{tpu_custom_call.1} parent=27 // pred_check_branch
          %157 = sbr.rel (%p155) target = $region36
        $region35: #{tpu_custom_call.1} parent=27 // pred_region
          %158 = dma.done [#allocation7], 16
        $region36: #{tpu_custom_call.1} parent=27 // pred_fallthru
          _
        %159 = sfence
        %s160 = sand.u32 %s28, 1
        %s161 = scalar_lea.sflag [#allocation5], %s160
        %s162 = sand.u32 %s28, 1
        %s163 = smul.addr %s162, 64
        %s164 = scalar_lea.vmem [#allocation4], %s163
        %p165 = pneg %p41
        %p166 = pneg %p38
        %p167 = pneg %p62
        %p168 = pneg %p59
        %p169 = pneg %p88
        %p170 = pneg %p85
        %s171 = sand.u32 %s75, 1
        %s172 = scalar_lea.sflag [#allocation6], %s171
        %s173 = sand.u32 %s75, 1
        %s174 = smul.addr %s173, 16
        %s175 = scalar_lea.vmem [#allocation9], %s174
        %v176 = vld [vmem:[%s150] sm:$0xff]
        %v177 = vld [vmem:[%s150 + $0x8] sm:$0xff]
        %v178 = vld [vmem:[%s150 + $0x10] sm:$0xff]
        %v179 = vld [vmem:[%s150 + $0x18] sm:$0xff]
        %v180 = vld [vmem:[%s150 + $0x20] sm:$0xff]
        %v181 = vld [vmem:[%s150 + $0x28] sm:$0xff]
        %v182 = vld [vmem:[%s150 + $0x30] sm:$0xff]
        %v183 = vld [vmem:[%s150 + $0x38] sm:$0xff]
        %vm184 = vcmask 130048
        %v185 = vsel %vm184, %v176, -inf
        %v186 = vsel %vm184, %v178, -inf
        %v187 = vsel %vm184, %v180, -inf
        %v188 = vmax.f32 %v185, %v187
        %v189 = vsel %vm184, %v182, -inf
        %v190 = vmax.f32 %v186, %v189
        %v191 = vmax.f32 %v188, %v190
        %v192 = vsel %vm184, %v177, -inf
        %v193 = vsel %vm184, %v179, -inf
        %v194 = vsel %vm184, %v181, -inf
        %v195 = vmax.f32 %v192, %v194
        %v196 = vsel %vm184, %v183, -inf
        %v197 = vmax.f32 %v193, %v196
        %v198 = vmax.f32 %v195, %v197
        %vm199 = vcmask 174080
        %200 = vst.msk [vmem:[#allocation2] sm:$0x7] %vm199, 0.0
        %201 = vst.msk [vmem:[#allocation2 + $0x13] sm:$0x7] %vm199, 0.0
        %vm202 = vcmask 23552
        %203 = vst.msk [vmem:[#allocation2] sm:$0xff] %vm202, 0.0
        %204 = vst.msk [vmem:[#allocation2 + $0x8] sm:$0xff] %vm202, 0.0
        %vm205 = vcmask 21504
        %206 = vst.msk [vmem:[#allocation2 + $0x10] sm:$0x3f] %vm205, 0.0
        %vm207 = vcmask 179352
        %208 = vst.msk [vmem:[#allocation2] sm:$0xff] %vm207, 0.0
        %209 = vst.msk [vmem:[#allocation2 + $0x8] sm:$0xff] %vm207, 0.0
        %vm210 = vcmask 177304
        %211 = vst.msk [vmem:[#allocation2 + $0x10] sm:$0x3f] %vm210, 0.0
        %214 = vrot.lane.b32.xlu0 %v191, 3
        %v215 = vpop.permute.xlu0 %214
        %216 = vrot.lane.b32.xlu0 %v198, 3
        %v217 = vpop.permute.xlu0 %216
        %vm220 = vcmask 154648
        %221 = vst.msk [vmem:[#allocation2 + $0x3] sm:$0xff] %vm220, %v215
        %222 = vst.msk [vmem:[#allocation2 + $0xb] sm:$0xff] %vm220, %v217
        %v223 = vld [vmem:[#allocation2] sm:$0xff]
        %v224 = vld [vmem:[#allocation2 + $0x8] sm:$0xff]
        %v225 = vld [vmem:[#allocation2 + $0x10] sm:$0x3f]
        %226 = vst.msk [vmem:[#allocation3] sm:$0xff] %vm184, %v223
        %227 = vst.msk [vmem:[#allocation3 + $0x8] sm:$0xff] %vm184, %v224
        %vm228 = vcmask 128000
        %229 = vst.msk [vmem:[#allocation3 + $0x10] sm:$0x3f] %vm228, %v225
        %v230 = vld [vmem:[#allocation2] sm:$0xff]
        %v231 = vld [vmem:[#allocation2 + $0x8] sm:$0xff]
        %v232 = vld [vmem:[#allocation2 + $0x10] sm:$0x3f]
        %236 = vrot.lane.b32.xlu0 %v230, 127
        %v237 = vpop.permute.xlu0 %236
        %238 = vrot.lane.b32.xlu0 %v231, 127
        %v239 = vpop.permute.xlu0 %238
        %240 = vrot.lane.b32.xlu0 %v232, 127
        %v241 = vpop.permute.xlu0 %240
        %s245 = scalar_lea.vmem [#allocation3], 24
        %246 = vst.msk [vmem:[%s245] sm:$0xff] %vm184, %v237
        %247 = vst.msk [vmem:[%s245 + $0x8] sm:$0xff] %vm184, %v239
        %248 = vst.msk [vmem:[%s245 + $0x10] sm:$0x3f] %vm228, %v241
        %v249 = vld [vmem:[#allocation2] sm:$0xff]
        %v250 = vld [vmem:[#allocation2 + $0x8] sm:$0xff]
        %v251 = vld [vmem:[#allocation2 + $0x10] sm:$0x3f]
        %255 = vrot.lane.b32.xlu0 %v249, 126
        %v256 = vpop.permute.xlu0 %255
        %257 = vrot.lane.b32.xlu0 %v250, 126
        %v258 = vpop.permute.xlu0 %257
        %259 = vrot.lane.b32.xlu0 %v251, 126
        %v260 = vpop.permute.xlu0 %259
        %s264 = scalar_lea.vmem [#allocation3], 48
        %265 = vst.msk [vmem:[%s264] sm:$0xff] %vm184, %v256
        %266 = vst.msk [vmem:[%s264 + $0x8] sm:$0xff] %vm184, %v258
        %267 = vst.msk [vmem:[%s264 + $0x10] sm:$0x3f] %vm228, %v260
        %v268 = vld [vmem:[#allocation2] sm:$0xff]
        %v269 = vld [vmem:[#allocation2 + $0x8] sm:$0xff]
        %v270 = vld [vmem:[#allocation2 + $0x10] sm:$0x3f]
        %274 = vrot.lane.b32.xlu0 %v268, 125
        %v275 = vpop.permute.xlu0 %274
        %276 = vrot.lane.b32.xlu0 %v269, 125
        %v277 = vpop.permute.xlu0 %276
        %278 = vrot.lane.b32.xlu0 %v270, 125
        %v279 = vpop.permute.xlu0 %278
        %s283 = scalar_lea.vmem [#allocation3], 72
        %284 = vst.msk [vmem:[%s283] sm:$0xff] %vm184, %v275
        %285 = vst.msk [vmem:[%s283 + $0x8] sm:$0xff] %vm184, %v277
        %286 = vst.msk [vmem:[%s283 + $0x10] sm:$0x3f] %vm228, %v279
        %v287 = vld [vmem:[#allocation2] sm:$0xff]
        %v288 = vld [vmem:[#allocation2 + $0x8] sm:$0xff]
        %v289 = vld [vmem:[#allocation2 + $0x10] sm:$0x3f]
        %293 = vrot.lane.b32.xlu0 %v287, 124
        %v294 = vpop.permute.xlu0 %293
        %295 = vrot.lane.b32.xlu0 %v288, 124
        %v296 = vpop.permute.xlu0 %295
        %297 = vrot.lane.b32.xlu0 %v289, 124
        %v298 = vpop.permute.xlu0 %297
        %s302 = scalar_lea.vmem [#allocation3], 96
        %303 = vst.msk [vmem:[%s302] sm:$0xff] %vm184, %v294
        %304 = vst.msk [vmem:[%s302 + $0x8] sm:$0xff] %vm184, %v296
        %305 = vst.msk [vmem:[%s302 + $0x10] sm:$0x3f] %vm228, %v298
        %v306 = vld [vmem:[#allocation2] sm:$0xff]
        %v307 = vld [vmem:[#allocation2 + $0x8] sm:$0xff]
        %v308 = vld [vmem:[#allocation2 + $0x10] sm:$0x3f]
        %312 = vrot.lane.b32.xlu0 %v306, 123
        %v313 = vpop.permute.xlu0 %312
        %314 = vrot.lane.b32.xlu0 %v307, 123
        %v315 = vpop.permute.xlu0 %314
        %316 = vrot.lane.b32.xlu0 %v308, 123
        %v317 = vpop.permute.xlu0 %316
        %s321 = scalar_lea.vmem [#allocation3], 120
        %322 = vst.msk [vmem:[%s321] sm:$0xff] %vm184, %v313
        %323 = vst.msk [vmem:[%s321 + $0x8] sm:$0xff] %vm184, %v315
        %324 = vst.msk [vmem:[%s321 + $0x10] sm:$0x3f] %vm228, %v317
        %v325 = vld [vmem:[#allocation2] sm:$0xff]
        %v326 = vld [vmem:[#allocation2 + $0x8] sm:$0xff]
        %v327 = vld [vmem:[#allocation2 + $0x10] sm:$0x3f]
        %331 = vrot.lane.b32.xlu0 %v325, 122
        %v332 = vpop.permute.xlu0 %331
        %333 = vrot.lane.b32.xlu0 %v326, 122
        %v334 = vpop.permute.xlu0 %333
        %335 = vrot.lane.b32.xlu0 %v327, 122
        %v336 = vpop.permute.xlu0 %335
        %s340 = scalar_lea.vmem [#allocation3], 144
        %341 = vst.msk [vmem:[%s340] sm:$0xff] %vm184, %v332
        %342 = vst.msk [vmem:[%s340 + $0x8] sm:$0xff] %vm184, %v334
        %343 = vst.msk [vmem:[%s340 + $0x10] sm:$0x3f] %vm228, %v336
        %v344 = vld [vmem:[#allocation3] sm:$0xff]
        %v345 = vld [vmem:[#allocation3 + $0x8] sm:$0xff]
        %s346 = sld [smem:[#allocation8]]
        %v347 = vstv %s346
        %v348 = vmul.f32 %v347, %v344
        %v349 = vmul.f32 %v347, %v345
        %v350 = vadd.f32 %v348, 0.0
        %v351 = vadd.f32 %v349, 0.0
        %v352 = vld [vmem:[#allocation3 + $0x1] sm:$0xff]
        %v353 = vld [vmem:[#allocation3 + $0x9] sm:$0xff]
        %s354 = sld [smem:[#allocation8 + $0x7]]
        %v355 = vstv %s354
        %v356 = vmul.f32 %v355, %v352
        %v357 = vmul.f32 %v355, %v353
        %v358 = vadd.f32 %v356, 0.0
        %v359 = vadd.f32 %v357, 0.0
        %v360 = vld [vmem:[#allocation3 + $0x2] sm:$0xff]
        %v361 = vld [vmem:[#allocation3 + $0xa] sm:$0xff]
        %s362 = sld [smem:[#allocation8 + $0xe]]
        %v363 = vstv %s362
        %v364 = vmul.f32 %v363, %v360
        %v365 = vmul.f32 %v363, %v361
        %v366 = vadd.f32 %v364, 0.0
        %v367 = vadd.f32 %v365, 0.0
        %v368 = vld [vmem:[#allocation3 + $0x3] sm:$0xff]
        %v369 = vld [vmem:[#allocation3 + $0xb] sm:$0xff]
        %s370 = sld [smem:[#allocation8 + $0x15]]
        %v371 = vstv %s370
        %v372 = vmul.f32 %v371, %v368
        %v373 = vmul.f32 %v371, %v369
        %v374 = vadd.f32 %v372, 0.0
        %v375 = vadd.f32 %v373, 0.0
        %v376 = vld [vmem:[#allocation3 + $0x4] sm:$0xff]
        %v377 = vld [vmem:[#allocation3 + $0xc] sm:$0xff]
        %s378 = sld [smem:[#allocation8 + $0x1c]]
        %v379 = vstv %s378
        %v380 = vmul.f32 %v379, %v376
        %v381 = vmul.f32 %v379, %v377
        %v382 = vadd.f32 %v350, %v380
        %v383 = vadd.f32 %v351, %v381
        %v384 = vld [vmem:[#allocation3 + $0x5] sm:$0xff]
        %v385 = vld [vmem:[#allocation3 + $0xd] sm:$0xff]
        %s386 = sld [smem:[#allocation8 + $0x23]]
        %v387 = vstv %s386
        %v388 = vmul.f32 %v387, %v384
        %v389 = vmul.f32 %v387, %v385
        %v390 = vadd.f32 %v358, %v388
        %v391 = vadd.f32 %v359, %v389
        %v392 = vld [vmem:[#allocation3 + $0x6] sm:$0xff]
        %v393 = vld [vmem:[#allocation3 + $0xe] sm:$0xff]
        %s394 = sld [smem:[#allocation8 + $0x2a]]
        %v395 = vstv %s394
        %v396 = vmul.f32 %v395, %v392
        %v397 = vmul.f32 %v395, %v393
        %v398 = vadd.f32 %v366, %v396
        %v399 = vadd.f32 %v367, %v397
        %v400 = vld [vmem:[%s245] sm:$0xff]
        %v401 = vld [vmem:[%s245 + $0x8] sm:$0xff]
        %s402 = sld [smem:[#allocation8 + $0x1]]
        %v403 = vstv %s402
        %v404 = vmul.f32 %v403, %v400
        %v405 = vmul.f32 %v403, %v401
        %v406 = vadd.f32 %v374, %v404
        %v407 = vadd.f32 %v375, %v405
        %v408 = vld [vmem:[%s245 + $0x1] sm:$0xff]
        %v409 = vld [vmem:[%s245 + $0x9] sm:$0xff]
        %s410 = sld [smem:[#allocation8 + $0x8]]
        %v411 = vstv %s410
        %v412 = vmul.f32 %v411, %v408
        %v413 = vmul.f32 %v411, %v409
        %v414 = vadd.f32 %v382, %v412
        %v415 = vadd.f32 %v383, %v413
        %v416 = vld [vmem:[%s245 + $0x2] sm:$0xff]
        %v417 = vld [vmem:[%s245 + $0xa] sm:$0xff]
        %s418 = sld [smem:[#allocation8 + $0xf]]
        %v419 = vstv %s418
        %v420 = vmul.f32 %v419, %v416
        %v421 = vmul.f32 %v419, %v417
        %v422 = vadd.f32 %v390, %v420
        %v423 = vadd.f32 %v391, %v421
        %v424 = vld [vmem:[%s245 + $0x3] sm:$0xff]
        %v425 = vld [vmem:[%s245 + $0xb] sm:$0xff]
        %s426 = sld [smem:[#allocation8 + $0x16]]
        %v427 = vstv %s426
        %v428 = vmul.f32 %v427, %v424
        %v429 = vmul.f32 %v427, %v425
        %v430 = vadd.f32 %v398, %v428
        %v431 = vadd.f32 %v399, %v429
        %v432 = vld [vmem:[%s245 + $0x4] sm:$0xff]
        %v433 = vld [vmem:[%s245 + $0xc] sm:$0xff]
        %s434 = sld [smem:[#allocation8 + $0x1d]]
        %v435 = vstv %s434
        %v436 = vmul.f32 %v435, %v432
        %v437 = vmul.f32 %v435, %v433
        %v438 = vadd.f32 %v406, %v436
        %v439 = vadd.f32 %v407, %v437
        %v440 = vld [vmem:[%s245 + $0x5] sm:$0xff]
        %v441 = vld [vmem:[%s245 + $0xd] sm:$0xff]
        %s442 = sld [smem:[#allocation8 + $0x24]]
        %v443 = vstv %s442
        %v444 = vmul.f32 %v443, %v440
        %v445 = vmul.f32 %v443, %v441
        %v446 = vadd.f32 %v414, %v444
        %v447 = vadd.f32 %v415, %v445
        %v448 = vld [vmem:[%s245 + $0x6] sm:$0xff]
        %v449 = vld [vmem:[%s245 + $0xe] sm:$0xff]
        %s450 = sld [smem:[#allocation8 + $0x2b]]
        %v451 = vstv %s450
        %v452 = vmul.f32 %v451, %v448
        %v453 = vmul.f32 %v451, %v449
        %v454 = vadd.f32 %v422, %v452
        %v455 = vadd.f32 %v423, %v453
        %v456 = vld [vmem:[%s264] sm:$0xff]
        %v457 = vld [vmem:[%s264 + $0x8] sm:$0xff]
        %s458 = sld [smem:[#allocation8 + $0x2]]
        %v459 = vstv %s458
        %v460 = vmul.f32 %v459, %v456
        %v461 = vmul.f32 %v459, %v457
        %v462 = vadd.f32 %v430, %v460
        %v463 = vadd.f32 %v431, %v461
        %v464 = vld [vmem:[%s264 + $0x1] sm:$0xff]
        %v465 = vld [vmem:[%s264 + $0x9] sm:$0xff]
        %s466 = sld [smem:[#allocation8 + $0x9]]
        %v467 = vstv %s466
        %v468 = vmul.f32 %v467, %v464
        %v469 = vmul.f32 %v467, %v465
        %v470 = vadd.f32 %v438, %v468
        %v471 = vadd.f32 %v439, %v469
        %v472 = vld [vmem:[%s264 + $0x2] sm:$0xff]
        %v473 = vld [vmem:[%s264 + $0xa] sm:$0xff]
        %s474 = sld [smem:[#allocation8 + $0x10]]
        %v475 = vstv %s474
        %v476 = vmul.f32 %v475, %v472
        %v477 = vmul.f32 %v475, %v473
        %v478 = vadd.f32 %v446, %v476
        %v479 = vadd.f32 %v447, %v477
        %v480 = vld [vmem:[%s264 + $0x3] sm:$0xff]
        %v481 = vld [vmem:[%s264 + $0xb] sm:$0xff]
        %s482 = sld [smem:[#allocation8 + $0x17]]
        %v483 = vstv %s482
        %v484 = vmul.f32 %v483, %v480
        %v485 = vmul.f32 %v483, %v481
        %v486 = vadd.f32 %v454, %v484
        %v487 = vadd.f32 %v455, %v485
        %v488 = vld [vmem:[%s264 + $0x4] sm:$0xff]
        %v489 = vld [vmem:[%s264 + $0xc] sm:$0xff]
        %s490 = sld [smem:[#allocation8 + $0x1e]]
        %v491 = vstv %s490
        %v492 = vmul.f32 %v491, %v488
        %v493 = vmul.f32 %v491, %v489
        %v494 = vadd.f32 %v462, %v492
        %v495 = vadd.f32 %v463, %v493
        %v496 = vld [vmem:[%s264 + $0x5] sm:$0xff]
        %v497 = vld [vmem:[%s264 + $0xd] sm:$0xff]
        %s498 = sld [smem:[#allocation8 + $0x25]]
        %v499 = vstv %s498
        %v500 = vmul.f32 %v499, %v496
        %v501 = vmul.f32 %v499, %v497
        %v502 = vadd.f32 %v470, %v500
        %v503 = vadd.f32 %v471, %v501
        %v504 = vld [vmem:[%s264 + $0x6] sm:$0xff]
        %v505 = vld [vmem:[%s264 + $0xe] sm:$0xff]
        %s506 = sld [smem:[#allocation8 + $0x2c]]
        %v507 = vstv %s506
        %v508 = vmul.f32 %v507, %v504
        %v509 = vmul.f32 %v507, %v505
        %v510 = vadd.f32 %v478, %v508
        %v511 = vadd.f32 %v479, %v509
        %v512 = vld [vmem:[%s283] sm:$0xff]
        %v513 = vld [vmem:[%s283 + $0x8] sm:$0xff]
        %s514 = sld [smem:[#allocation8 + $0x3]]
        %v515 = vstv %s514
        %v516 = vmul.f32 %v515, %v512
        %v517 = vmul.f32 %v515, %v513
        %v518 = vadd.f32 %v486, %v516
        %v519 = vadd.f32 %v487, %v517
        %v520 = vld [vmem:[%s283 + $0x1] sm:$0xff]
        %v521 = vld [vmem:[%s283 + $0x9] sm:$0xff]
        %s522 = sld [smem:[#allocation8 + $0xa]]
        %v523 = vstv %s522
        %v524 = vmul.f32 %v523, %v520
        %v525 = vmul.f32 %v523, %v521
        %v526 = vadd.f32 %v494, %v524
        %v527 = vadd.f32 %v495, %v525
        %v528 = vld [vmem:[%s283 + $0x2] sm:$0xff]
        %v529 = vld [vmem:[%s283 + $0xa] sm:$0xff]
        %s530 = sld [smem:[#allocation8 + $0x11]]
        %v531 = vstv %s530
        %v532 = vmul.f32 %v531, %v528
        %v533 = vmul.f32 %v531, %v529
        %v534 = vadd.f32 %v502, %v532
        %v535 = vadd.f32 %v503, %v533
        %v536 = vld [vmem:[%s283 + $0x3] sm:$0xff]
        %v537 = vld [vmem:[%s283 + $0xb] sm:$0xff]
        %s538 = sld [smem:[#allocation8 + $0x18]]
        %v539 = vstv %s538
        %v540 = vmul.f32 %v539, %v536
        %v541 = vmul.f32 %v539, %v537
        %v542 = vadd.f32 %v510, %v540
        %v543 = vadd.f32 %v511, %v541
        %v544 = vld [vmem:[%s283 + $0x4] sm:$0xff]
        %v545 = vld [vmem:[%s283 + $0xc] sm:$0xff]
        %s546 = sld [smem:[#allocation8 + $0x1f]]
        %v547 = vstv %s546
        %v548 = vmul.f32 %v547, %v544
        %v549 = vmul.f32 %v547, %v545
        %v550 = vadd.f32 %v518, %v548
        %v551 = vadd.f32 %v519, %v549
        %v552 = vld [vmem:[%s283 + $0x5] sm:$0xff]
        %v553 = vld [vmem:[%s283 + $0xd] sm:$0xff]
        %s554 = sld [smem:[#allocation8 + $0x26]]
        %v555 = vstv %s554
        %v556 = vmul.f32 %v555, %v552
        %v557 = vmul.f32 %v555, %v553
        %v558 = vadd.f32 %v526, %v556
        %v559 = vadd.f32 %v527, %v557
        %v560 = vld [vmem:[%s283 + $0x6] sm:$0xff]
        %v561 = vld [vmem:[%s283 + $0xe] sm:$0xff]
        %s562 = sld [smem:[#allocation8 + $0x2d]]
        %v563 = vstv %s562
        %v564 = vmul.f32 %v563, %v560
        %v565 = vmul.f32 %v563, %v561
        %v566 = vadd.f32 %v534, %v564
        %v567 = vadd.f32 %v535, %v565
        %v568 = vld [vmem:[%s302] sm:$0xff]
        %v569 = vld [vmem:[%s302 + $0x8] sm:$0xff]
        %s570 = sld [smem:[#allocation8 + $0x4]]
        %v571 = vstv %s570
        %v572 = vmul.f32 %v571, %v568
        %v573 = vmul.f32 %v571, %v569
        %v574 = vadd.f32 %v542, %v572
        %v575 = vadd.f32 %v543, %v573
        %v576 = vld [vmem:[%s302 + $0x1] sm:$0xff]
        %v577 = vld [vmem:[%s302 + $0x9] sm:$0xff]
        %s578 = sld [smem:[#allocation8 + $0xb]]
        %v579 = vstv %s578
        %v580 = vmul.f32 %v579, %v576
        %v581 = vmul.f32 %v579, %v577
        %v582 = vadd.f32 %v550, %v580
        %v583 = vadd.f32 %v551, %v581
        %v584 = vld [vmem:[%s302 + $0x2] sm:$0xff]
        %v585 = vld [vmem:[%s302 + $0xa] sm:$0xff]
        %s586 = sld [smem:[#allocation8 + $0x12]]
        %v587 = vstv %s586
        %v588 = vmul.f32 %v587, %v584
        %v589 = vmul.f32 %v587, %v585
        %v590 = vadd.f32 %v558, %v588
        %v591 = vadd.f32 %v559, %v589
        %v592 = vld [vmem:[%s302 + $0x3] sm:$0xff]
        %v593 = vld [vmem:[%s302 + $0xb] sm:$0xff]
        %s594 = sld [smem:[#allocation8 + $0x19]]
        %v595 = vstv %s594
        %v596 = vmul.f32 %v595, %v592
        %v597 = vmul.f32 %v595, %v593
        %v598 = vadd.f32 %v566, %v596
        %v599 = vadd.f32 %v567, %v597
        %v600 = vld [vmem:[%s302 + $0x4] sm:$0xff]
        %v601 = vld [vmem:[%s302 + $0xc] sm:$0xff]
        %s602 = sld [smem:[#allocation8 + $0x20]]
        %v603 = vstv %s602
        %v604 = vmul.f32 %v603, %v600
        %v605 = vmul.f32 %v603, %v601
        %v606 = vadd.f32 %v574, %v604
        %v607 = vadd.f32 %v575, %v605
        %v608 = vld [vmem:[%s302 + $0x5] sm:$0xff]
        %v609 = vld [vmem:[%s302 + $0xd] sm:$0xff]
        %s610 = sld [smem:[#allocation8 + $0x27]]
        %v611 = vstv %s610
        %v612 = vmul.f32 %v611, %v608
        %v613 = vmul.f32 %v611, %v609
        %v614 = vadd.f32 %v582, %v612
        %v615 = vadd.f32 %v583, %v613
        %v616 = vld [vmem:[%s302 + $0x6] sm:$0xff]
        %v617 = vld [vmem:[%s302 + $0xe] sm:$0xff]
        %s618 = sld [smem:[#allocation8 + $0x2e]]
        %v619 = vstv %s618
        %v620 = vmul.f32 %v619, %v616
        %v621 = vmul.f32 %v619, %v617
        %v622 = vadd.f32 %v590, %v620
        %v623 = vadd.f32 %v591, %v621
        %v624 = vld [vmem:[%s321] sm:$0xff]
        %v625 = vld [vmem:[%s321 + $0x8] sm:$0xff]
        %s626 = sld [smem:[#allocation8 + $0x5]]
        %v627 = vstv %s626
        %v628 = vmul.f32 %v627, %v624
        %v629 = vmul.f32 %v627, %v625
        %v630 = vadd.f32 %v598, %v628
        %v631 = vadd.f32 %v599, %v629
        %v632 = vld [vmem:[%s321 + $0x1] sm:$0xff]
        %v633 = vld [vmem:[%s321 + $0x9] sm:$0xff]
        %s634 = sld [smem:[#allocation8 + $0xc]]
        %v635 = vstv %s634
        %v636 = vmul.f32 %v635, %v632
        %v637 = vmul.f32 %v635, %v633
        %v638 = vadd.f32 %v606, %v636
        %v639 = vadd.f32 %v607, %v637
        %v640 = vld [vmem:[%s321 + $0x2] sm:$0xff]
        %v641 = vld [vmem:[%s321 + $0xa] sm:$0xff]
        %s642 = sld [smem:[#allocation8 + $0x13]]
        %v643 = vstv %s642
        %v644 = vmul.f32 %v643, %v640
        %v645 = vmul.f32 %v643, %v641
        %v646 = vadd.f32 %v614, %v644
        %v647 = vadd.f32 %v615, %v645
        %v648 = vld [vmem:[%s321 + $0x3] sm:$0xff]
        %v649 = vld [vmem:[%s321 + $0xb] sm:$0xff]
        %s650 = sld [smem:[#allocation8 + $0x1a]]
        %v651 = vstv %s650
        %v652 = vmul.f32 %v651, %v648
        %v653 = vmul.f32 %v651, %v649
        %v654 = vadd.f32 %v622, %v652
        %v655 = vadd.f32 %v623, %v653
        %v656 = vld [vmem:[%s321 + $0x4] sm:$0xff]
        %v657 = vld [vmem:[%s321 + $0xc] sm:$0xff]
        %s658 = sld [smem:[#allocation8 + $0x21]]
        %v659 = vstv %s658
        %v660 = vmul.f32 %v659, %v656
        %v661 = vmul.f32 %v659, %v657
        %v662 = vadd.f32 %v630, %v660
        %v663 = vadd.f32 %v631, %v661
        %v664 = vld [vmem:[%s321 + $0x5] sm:$0xff]
        %v665 = vld [vmem:[%s321 + $0xd] sm:$0xff]
        %s666 = sld [smem:[#allocation8 + $0x28]]
        %v667 = vstv %s666
        %v668 = vmul.f32 %v667, %v664
        %v669 = vmul.f32 %v667, %v665
        %v670 = vadd.f32 %v638, %v668
        %v671 = vadd.f32 %v639, %v669
        %v672 = vld [vmem:[%s321 + $0x6] sm:$0xff]
        %v673 = vld [vmem:[%s321 + $0xe] sm:$0xff]
        %s674 = sld [smem:[#allocation8 + $0x2f]]
        %v675 = vstv %s674
        %v676 = vmul.f32 %v675, %v672
        %v677 = vmul.f32 %v675, %v673
        %v678 = vadd.f32 %v646, %v676
        %v679 = vadd.f32 %v647, %v677
        %v680 = vld [vmem:[%s340] sm:$0xff]
        %v681 = vld [vmem:[%s340 + $0x8] sm:$0xff]
        %s682 = sld [smem:[#allocation8 + $0x6]]
        %v683 = vstv %s682
        %v684 = vmul.f32 %v683, %v680
        %v685 = vmul.f32 %v683, %v681
        %v686 = vadd.f32 %v654, %v684
        %v687 = vadd.f32 %v655, %v685
        %v688 = vld [vmem:[%s340 + $0x1] sm:$0xff]
        %v689 = vld [vmem:[%s340 + $0x9] sm:$0xff]
        %s690 = sld [smem:[#allocation8 + $0xd]]
        %v691 = vstv %s690
        %v692 = vmul.f32 %v691, %v688
        %v693 = vmul.f32 %v691, %v689
        %v694 = vadd.f32 %v662, %v692
        %v695 = vadd.f32 %v663, %v693
        %v696 = vld [vmem:[%s340 + $0x2] sm:$0xff]
        %v697 = vld [vmem:[%s340 + $0xa] sm:$0xff]
        %s698 = sld [smem:[#allocation8 + $0x14]]
        %v699 = vstv %s698
        %v700 = vmul.f32 %v699, %v696
        %v701 = vmul.f32 %v699, %v697
        %v702 = vadd.f32 %v670, %v700
        %v703 = vadd.f32 %v671, %v701
        %v704 = vld [vmem:[%s340 + $0x3] sm:$0xff]
        %v705 = vld [vmem:[%s340 + $0xb] sm:$0xff]
        %s706 = sld [smem:[#allocation8 + $0x1b]]
        %v707 = vstv %s706
        %v708 = vmul.f32 %v707, %v704
        %v709 = vmul.f32 %v707, %v705
        %v710 = vadd.f32 %v678, %v708
        %v711 = vadd.f32 %v679, %v709
        %v712 = vld [vmem:[%s340 + $0x4] sm:$0xff]
        %v713 = vld [vmem:[%s340 + $0xc] sm:$0xff]
        %s714 = sld [smem:[#allocation8 + $0x22]]
        %v715 = vstv %s714
        %v716 = vmul.f32 %v715, %v712
        %v717 = vmul.f32 %v715, %v713
        %v718 = vadd.f32 %v686, %v716
        %v719 = vadd.f32 %v687, %v717
        %v720 = vld [vmem:[%s340 + $0x5] sm:$0xff]
        %v721 = vld [vmem:[%s340 + $0xd] sm:$0xff]
        %s722 = sld [smem:[#allocation8 + $0x29]]
        %v723 = vstv %s722
        %v724 = vmul.f32 %v723, %v720
        %v725 = vmul.f32 %v723, %v721
        %v726 = vadd.f32 %v694, %v724
        %v727 = vadd.f32 %v695, %v725
        %v728 = vld [vmem:[%s340 + $0x6] sm:$0xff]
        %v729 = vld [vmem:[%s340 + $0xe] sm:$0xff]
        %s730 = sld [smem:[#allocation8 + $0x30]]
        %v731 = vstv %s730
        %v732 = vmul.f32 %v731, %v728
        %v733 = vmul.f32 %v731, %v729
        %v734 = vadd.f32 %v702, %v732
        %v735 = vadd.f32 %v703, %v733
        %v736 = vadd.f32 %v734, %v710
        %v737 = vadd.f32 %v735, %v711
        %v738 = vadd.f32 %v718, %v726
        %v739 = vadd.f32 %v719, %v727
        %v740 = vadd.f32 %v736, %v738
        %v741 = vadd.f32 %v737, %v739
        %v742 = vxor.u32 %v740, 2147483648
        %v743 = vxor.u32 %v741, 2147483648
        %v744 = vmul.f32 %v742, 1.442695
        %v745 = vpow.pop %v744
        %v746 = vmul.f32 %v743, 1.442695
        %v747 = vpow.pop %v746
        %v748 = vadd.f32 %v745, 1.0
        %v749 = vadd.f32 %v747, 1.0
        %v750 = vrcp.pop %v748
        %v751 = vmul.f32 1.0, %v750
        %v752 = vrcp.pop %v749
        %v753 = vmul.f32 1.0, %v752
        %754 = vst.msk [vmem:[%s175] sm:$0xff] %vm184, %v751
        %755 = vst.msk [vmem:[%s175 + $0x8] sm:$0xff] %vm184, %v753
        %s756 = sand.u32 %s75, 1
        %s757 = scalar_lea.sflag [#allocation6], %s756
        %s758 = sand.u32 %s75, 1
        %s759 = smul.addr %s758, 16
        %s760 = scalar_lea.vmem [#allocation9], %s759
        // Predicated region
        $region37: #{tpu_custom_call.1} parent=27 // pred_check
          %p761 = pneg %p85
        $region38: #{tpu_custom_call.1} parent=27 // pred_check_branch
          %763 = sbr.rel (%p761) target = $region40
        $region39: #{tpu_custom_call.1} parent=27 // pred_region
          %s765 = ssub.s32 256, 256
          %766 = vsyncadd %s757, %s765
          %s767 = smul.addr %s20, 2
          %s768 = smul.addr %s767, 128
          %s769 = scalar_lea.hbm %s2, %s768
          %s770 = sshll.u32 %s760, 4
          %s771 = int_to_ptr.vmem [resolvable:$true] %s770
          %776 = dma.vmem_to_hbm [thread:$0]  %s771, 256, %s769, %s757, 128, 128, 8
        $region40: #{tpu_custom_call.1} parent=27 // pred_fallthru
          _
      $region28: #{tpu_custom_call.1} parent=5 // pred_fallthru
        _
      %p777 = scmp.le.s32.totalorder 2, %s15
      // Predicated region
      $region41: #{tpu_custom_call.1} parent=5 // pred_check
        %p778 = pneg %p777
      $region42: #{tpu_custom_call.1} parent=5 // pred_check_branch
        %780 = sbr.rel (%p778) target = $region44
      $region43: #{tpu_custom_call.1} parent=5 // pred_region
        %s781 = ssub.s32 %s15, 2
        // Predicated region
        $region45: #{tpu_custom_call.1} parent=43 // pred_check
          %p782 = pneg %p91
        $region46: #{tpu_custom_call.1} parent=43 // pred_check_branch
          %784 = sbr.rel (%p782) target = $region48
        $region47: #{tpu_custom_call.1} parent=43 // pred_region
          %s785 = sand.u32 %s76, 1
          %s786 = scalar_lea.sflag [#allocation6], %s785
          %s787 = sand.u32 %s76, 1
          %s788 = smul.addr %s787, 16
          %s789 = scalar_lea.vmem [#allocation9], %s788
          %790 = dma.done %s786, 256
        $region48: #{tpu_custom_call.1} parent=43 // pred_fallthru
          _
      $region44: #{tpu_custom_call.1} parent=5 // pred_fallthru
        _
    $region6: #{tpu_custom_call.1} parent=1 // loop_footer
      %s19 = sadd.s32 1, %s15
    $region7: #{tpu_custom_call.1} parent=1 // loop_footer_branch
      %14 = sbr.rel target = $region3
    $region8: #{tpu_custom_call.1} parent=1 // loop_exit
      _
    %791 = vsyncpa [#allocation5], 1
    %s792 = scalar_lea.sflag [#allocation5], 1
    %793 = vsyncpa %s792, 1
    %794 = vsyncpa [#allocation6], 1
    %s795 = scalar_lea.sflag [#allocation6], 1
    %796 = vsyncpa %s795, 1
    %797 = vsyncpa [#allocation7], 1
    %s798 = scalar_lea.sflag [#allocation7], 1
    %799 = vsyncpa %s798, 1

</llo_original>
